<compile_context>
chip_gen: v5e
topology: v5e:2x2
jax: 0.10.0
libtpu: 0.0.40
codegen_flags: <defaults>
</compile_context>

<pallas_src>
import functools
import math

import jax
import jax.numpy as jnp
from jax.experimental import pallas as pl
from jax.experimental.pallas import tpu as pltpu


def _attn_core_kernel(q_ref, k_ref, v_ref, o_ref, p_ref=None, *, scale, mxu_dtype):
    # Block shapes:
    #   q_ref: (1, Tq, Hblk, D)    k_ref/v_ref: (1, S, Hblk, D)
    #   o_ref: (1, Tq, Hblk*D)     p_ref (optional): (1, Hblk, Tq, S) f32
    q = q_ref[0] * scale                     # fold 1/sqrt(D): Tq*Hblk*D muls
    k = k_ref[0]
    v = v_ref[0]
    if mxu_dtype is not None:                # optional bf16 MXU path (v6e/v7x)
        q = q.astype(mxu_dtype)
        k = k.astype(mxu_dtype)

    # QK^T on the MXU: contract D, batch over the head axis (no transposes),
    # f32 accumulation.  q:(Tq,Hblk,D) x k:(S,Hblk,D) -> (Hblk,Tq,S).
    s = jax.lax.dot_general(
        q, k, (((2,), (2,)), ((1,), (1,))),
        preferred_element_type=jnp.float32)

    # Numerically stable softmax statistics.
    m = jnp.max(s, axis=-1, keepdims=True)
    e = jnp.exp(s - m)                       # (Hblk, Tq, S)
    l = jnp.sum(e, axis=-1, keepdims=True)   # (Hblk, Tq, 1)
    # Exact reciprocal: it is only (Hblk, Tq, 1) wide now, so the approximate
    # EUP reciprocal buys nothing and would make weights not sum to 1.
    inv_l = 1.0 / l

    # PV with the *unnormalized* exponentials; normalize the (Hblk, Tq, D)
    # result instead of the S^2-wide probabilities (no S^2 VPU multiply on
    # the fast path, shorter critical path into the second MXU matmul).
    pv_dtype = mxu_dtype if mxu_dtype is not None else v.dtype
    o = jax.lax.dot_general(
        e.astype(pv_dtype), v.astype(pv_dtype),
        (((2,), (0,)), ((0,), (1,))),
        preferred_element_type=jnp.float32)  # (Hblk, Tq, D)
    o = o * inv_l

    # (Hblk, Tq, D) -> (Tq, Hblk*D): single lane-dense store matching the
    # (B, S, H*D) output layout (heads contiguous along the last axis).
    tq = o.shape[1]
    o_ref[0] = jnp.swapaxes(o, 0, 1).reshape(tq, -1).astype(o_ref.dtype)

    if p_ref is not None:
        # Exact softmax weights, only materialized when requested (f32 so the
        # returned weights keep full precision regardless of input dtype).
        p_ref[0] = (e * inv_l).astype(p_ref.dtype)


def _vmem_capacity_bytes():
    try:
        return int(pltpu.get_tpu_info().vmem_capacity_bytes)
    except Exception:
        return 64 * 1024 * 1024   # conservative default (v7x per-TensorCore)


def _select_tiles(h, s, d, itemsize, budget_bytes, return_weights):
    """Pick (Tq, Hblk) so the per-step working set fits the VMEM budget.

    Mosaic tiling: the last two dims of every block must be divisible by
    (8, 128) or equal the full array dims, so Tq is a multiple of 8 (or == S)
    and either Hblk == H or (Hblk % 8 == 0 and (Hblk*D) % 128 == 0).
    """
    tq_cands = [c for c in (512, 256, 128, 64, 32, 16, 8) if s % c == 0] or [s]
    hblk_cands = [x for x in range(h, 0, -1)
                  if h % x == 0
                  and (x == h or (x % 8 == 0 and (x * d) % 128 == 0))]
    if not hblk_cands:
        hblk_cands = [h]

    def step_bytes(tq, hblk):
        q_o = 2 * tq * hblk * d * itemsize          # q block + o block
        k_v = 2 * s * hblk * d * itemsize           # k block + v block
        p = tq * hblk * s * 4 if return_weights else 0
        f32_tmp = 3 * tq * hblk * s * 4             # scores + exp (+ headroom)
        return 2 * (q_o + k_v + p) + f32_tmp        # x2: double buffering

    for tq in tq_cands:            # prefer the largest query tile ...
        for hblk in hblk_cands:    # ... then as many heads as still fit
            if step_bytes(tq, hblk) <= budget_bytes:
                return tq, hblk
    return tq_cands[-1], hblk_cands[-1]


def pallas_sdpa(q, k, v, *, return_weights=False, mxu_dtype=None):
    """Scaled dot-product attention.

    q, k, v: (B, S, H, D)  ->  (attn_out (B, S, H*D), weights (B,H,S,S) | None)

    * (B, S, H, D) in / (B, S, H*D) out: no HBM transposes in the wrapper and
      a lane-dense output store.
    * The S^2 weights writeback only happens when `return_weights=True`.
    """
    b, s, h, d = q.shape
    scale = 1.0 / math.sqrt(d)
    itemsize = jnp.dtype(q.dtype).itemsize

    cap = _vmem_capacity_bytes()
    tq, hblk = _select_tiles(h, s, d, itemsize, cap // 2, return_weights)

    grid = (b, h // hblk, s // tq)
    in_specs = [
        pl.BlockSpec((1, tq, hblk, d), lambda bi, hi, qi: (bi, qi, hi, 0)),
        # K/V block indices are constant across the innermost qi axis, so they
        # stay resident in VMEM for a whole (batch, head-block) row.
        pl.BlockSpec((1, s, hblk, d), lambda bi, hi, qi: (bi, 0, hi, 0)),
        pl.BlockSpec((1, s, hblk, d), lambda bi, hi, qi: (bi, 0, hi, 0)),
    ]
    out_spec_o = pl.BlockSpec((1, tq, hblk * d), lambda bi, hi, qi: (bi, qi, hi))
    out_shape_o = jax.ShapeDtypeStruct((b, s, h * d), q.dtype)

    bytes_io = 4 * b * s * h * d * itemsize
    if return_weights:
        out_shape = (out_shape_o,
                     jax.ShapeDtypeStruct((b, h, s, s), jnp.float32))
        out_specs = (out_spec_o,
                     pl.BlockSpec((1, hblk, tq, s),
                                  lambda bi, hi, qi: (bi, hi, qi, 0)))
        bytes_io += b * h * s * s * 4
    else:
        out_shape = out_shape_o
        out_specs = out_spec_o

    kernel = functools.partial(_attn_core_kernel, scale=scale, mxu_dtype=mxu_dtype)
    vmem_limit = max(32 * 1024 * 1024, min(int(0.85 * cap), 112 * 1024 * 1024))

    result = pl.pallas_call(
        kernel,
        grid=grid,
        in_specs=in_specs,
        out_specs=out_specs,
        out_shape=out_shape,
        compiler_params=pltpu.CompilerParams(
            # qi innermost + "arbitrary": megacore (v7x) shards only B/H and
            # never duplicates the K/V blocks that are reused across qi.
            dimension_semantics=("parallel", "parallel", "arbitrary"),
            vmem_limit_bytes=vmem_limit,
        ),
        cost_estimate=pl.CostEstimate(
            flops=4 * b * h * s * s * d,
            transcendentals=b * h * s * s,
            bytes_accessed=bytes_io,
        ),
    )(q, k, v)

    if return_weights:
        return result[0], result[1]
    return result, None


class MultiHeadSelfAttention:
    """The concrete `attn` module wrapped by AttnWrapper (HF-style: returns
    (attn_output,) or (attn_output, attn_weights) when output_attentions)."""

    def __init__(self, embed_dim, num_heads, key):
        assert embed_dim % num_heads == 0
        self.embed_dim = embed_dim
        self.num_heads = num_heads
        self.head_dim = embed_dim // num_heads
        kq, kk, kv, ko = jax.random.split(key, 4)
        std = 1.0 / math.sqrt(embed_dim)
        self.wq = jax.random.normal(kq, (embed_dim, embed_dim), jnp.float32) * std
        self.wk = jax.random.normal(kk, (embed_dim, embed_dim), jnp.float32) * std
        self.wv = jax.random.normal(kv, (embed_dim, embed_dim), jnp.float32) * std
        self.wo = jax.random.normal(ko, (embed_dim, embed_dim), jnp.float32) * std

    def __call__(self, x, output_attentions=False):
        # x: (B, S, E).  Projections stay in (B, S, H, D) layout — no
        # transposes; the kernel's BlockSpecs slice heads along axis 2.
        b, s, e = x.shape
        h, d = self.num_heads, self.head_dim
        q = (x @ self.wq).reshape(b, s, h, d)
        k = (x @ self.wk).reshape(b, s, h, d)
        v = (x @ self.wv).reshape(b, s, h, d)

        attn_out, attn_w = pallas_sdpa(q, k, v, return_weights=output_attentions)
        out = attn_out @ self.wo               # attn_out already (B, S, E)

        if output_attentions:
            return (out, attn_w)
        return (out,)


class AttnWrapper:
    """JAX equivalent of the PyTorch AttnWrapper: forwards to `attn`, caches
    output[0] in `self.activations`, and returns the full output."""
    # TODO(synk): the Python-attribute activation cache is an eager-mode side
    # effect; under jax.jit it would have to be returned as an extra output.

    def __init__(self, attn):
        self.attn = attn
        self.activations = None

    def __call__(self, *args, **kwargs):
        output = self.attn(*args, **kwargs)
        self.activations = output[0]
        return output


def _reference_sdpa(q, k, v):
    # q, k, v: (B, S, H, D); HIGHEST precision so the comparison is not
    # polluted by XLA's default (bf16-pass) matmul precision on TPU.
    b, s, h, d = q.shape
    scores = jnp.einsum("bqhd,bkhd->bhqk", q, k,
                        precision=jax.lax.Precision.HIGHEST) / math.sqrt(d)
    p = jax.nn.softmax(scores, axis=-1)
    o = jnp.einsum("bhqk,bkhd->bqhd", p, v,
                   precision=jax.lax.Precision.HIGHEST)
    return o.reshape(b, s, h * d), p


if __name__ == "__main__":
    B, S, E, H = 2, 8, 32, 4   # batch, seq, hidden, heads (head_dim = 8)

    key = jax.random.PRNGKey(0)
    k_param, k_x = jax.random.split(key)

    attn = MultiHeadSelfAttention(E, H, k_param)
    wrapper = AttnWrapper(attn)
    x = jax.random.normal(k_x, (B, S, E), jnp.float32)

    # Fast path: AttnWrapper only caches output[0]; no S^2 weights writeback.
    output = wrapper(x)
    jax.block_until_ready(output)
    jax.block_until_ready(wrapper.activations)
    assert wrapper.activations.shape == (B, S, E)
    assert wrapper.activations is output[0]

    # Weights path (kwargs forwarded through the wrapper, HF-style).
    output_w = wrapper(x, output_attentions=True)
    jax.block_until_ready(output_w)
    assert output_w[1].shape == (B, H, S, S)
    assert wrapper.activations.shape == (B, S, E)

    # Numerical check of the Pallas core against a pure-JAX reference.
    D = E // H
    q = (x @ attn.wq).reshape(B, S, H, D)
    kk = (x @ attn.wk).reshape(B, S, H, D)
    vv = (x @ attn.wv).reshape(B, S, H, D)
    ref_o, ref_p = _reference_sdpa(q, kk, vv)

    got_o, got_p = pallas_sdpa(q, kk, vv, return_weights=True)
    assert got_o.shape == (B, S, E) and got_p.shape == (B, H, S, S)
    assert jnp.allclose(got_o, ref_o, atol=2e-3, rtol=2e-3)
    assert jnp.allclose(got_p, ref_p, atol=2e-3, rtol=2e-3)

    fast_o, fast_p = pallas_sdpa(q, kk, vv)      # weights skipped entirely
    assert fast_p is None
    assert jnp.allclose(fast_o, ref_o, atol=2e-3, rtol=2e-3)

    # Full-module sanity (looser: the O projection runs at XLA's default
    # matmul precision on both sides).
    ref_full = ref_o @ attn.wo
    assert jnp.allclose(output[0], ref_full, atol=2e-2, rtol=2e-2)

    print("KERNEL_OK")
</pallas_src>

<mosaic_0001>
module attributes {stable_mosaic.version = 11 : i64} {
  func.func @_attn_core_kernel(%arg0: i32, %arg1: i32, %arg2: i32, %arg3: memref<1x8x4x8xf32, #tpu.memory_space<vmem>>, %arg4: memref<1x8x4x8xf32, #tpu.memory_space<vmem>>, %arg5: memref<1x8x4x8xf32, #tpu.memory_space<vmem>>, %arg6: memref<1x8x32xf32, #tpu.memory_space<vmem>>) attributes {dimension_semantics = [#tpu.dimension_semantics<parallel>, #tpu.dimension_semantics<parallel>, #tpu.dimension_semantics<arbitrary>], iteration_bounds = array<i64: 2, 1, 1>, scalar_prefetch = 0 : i64, scratch_operands = 0 : i64, tpu.core_type = #tpu.core_type<tc>, window_params = [{transform_indices = @transform_0, window_bounds = array<i64: 1, 8, 4, 8>}, {transform_indices = @transform_1, window_bounds = array<i64: 1, 8, 4, 8>}, {transform_indices = @transform_2, window_bounds = array<i64: 1, 8, 4, 8>}, {transform_indices = @transform_3, window_bounds = array<i64: 1, 8, 32>}]} {
    %c0 = arith.constant 0 : index
    %c0_0 = arith.constant 0 : index
    %c0_1 = arith.constant 0 : index
    %c0_2 = arith.constant 0 : index
    %0 = vector.load %arg3[%c0, %c0_0, %c0_1, %c0_2] : memref<1x8x4x8xf32, #tpu.memory_space<vmem>>, vector<1x8x4x8xf32>
    %1 = vector.shape_cast %0 : vector<1x8x4x8xf32> to vector<8x4x8xf32>
    %cst = arith.constant 0.353553385 : f32
    %2 = vector.broadcast %cst : f32 to vector<8x4x8xf32>
    %3 = arith.mulf %1, %2 : vector<8x4x8xf32>
    %c0_3 = arith.constant 0 : index
    %c0_4 = arith.constant 0 : index
    %c0_5 = arith.constant 0 : index
    %c0_6 = arith.constant 0 : index
    %4 = vector.load %arg4[%c0_3, %c0_4, %c0_5, %c0_6] : memref<1x8x4x8xf32, #tpu.memory_space<vmem>>, vector<1x8x4x8xf32>
    %5 = vector.shape_cast %4 : vector<1x8x4x8xf32> to vector<8x4x8xf32>
    %c0_7 = arith.constant 0 : index
    %c0_8 = arith.constant 0 : index
    %c0_9 = arith.constant 0 : index
    %c0_10 = arith.constant 0 : index
    %6 = vector.load %arg5[%c0_7, %c0_8, %c0_9, %c0_10] : memref<1x8x4x8xf32, #tpu.memory_space<vmem>>, vector<1x8x4x8xf32>
    %7 = vector.shape_cast %6 : vector<1x8x4x8xf32> to vector<8x4x8xf32>
    %cst_11 = arith.constant dense<0.000000e+00> : vector<4x8x8xf32>
    %8 = tpu.matmul %3, %5, %cst_11 {dimension_numbers = #tpu.dot_dimension_numbers<[2], [2], [0], [0], [0, 1, 0, 0, 1, 0], [1], [1]>} : vector<8x4x8xf32>, vector<8x4x8xf32>, vector<4x8x8xf32> -> vector<4x8x8xf32>
    %cst_12 = arith.constant dense<0xFF800000> : vector<4x8xf32>
    %9 = vector.multi_reduction <maximumf>, %8, %cst_12 [2] : vector<4x8x8xf32> to vector<4x8xf32>
    %10 = vector.shape_cast %9 : vector<4x8xf32> to vector<4x8x1xf32>
    %11 = vector.broadcast %10 : vector<4x8x1xf32> to vector<4x8x8xf32>
    %12 = arith.subf %8, %11 : vector<4x8x8xf32>
    %13 = math.exp %12 : vector<4x8x8xf32>
    %cst_13 = arith.constant dense<0.000000e+00> : vector<4x8xf32>
    %14 = vector.multi_reduction <add>, %13, %cst_13 [2] : vector<4x8x8xf32> to vector<4x8xf32>
    %15 = vector.shape_cast %14 : vector<4x8xf32> to vector<4x8x1xf32>
    %cst_14 = arith.constant 1.000000e+00 : f32
    %16 = vector.broadcast %cst_14 : f32 to vector<4x8x1xf32>
    %17 = arith.divf %16, %15 : vector<4x8x1xf32>
    %cst_15 = arith.constant dense<0.000000e+00> : vector<4x8x8xf32>
    %18 = tpu.matmul %13, %7, %cst_15 {dimension_numbers = #tpu.dot_dimension_numbers<[2], [0], [1], [2], [0, 0, 0, 1, 1, 2], [0], [1]>} : vector<4x8x8xf32>, vector<8x4x8xf32>, vector<4x8x8xf32> -> vector<4x8x8xf32>
    %19 = vector.broadcast %17 : vector<4x8x1xf32> to vector<4x8x8xf32>
    %20 = arith.mulf %18, %19 : vector<4x8x8xf32>
    %21 = tpu.transpose %20, [1, 0, 2] : vector<4x8x8xf32> -> vector<8x4x8xf32>
    %22 = vector.shape_cast %21 : vector<8x4x8xf32> to vector<8x32xf32>
    %c0_16 = arith.constant 0 : index
    %c0_17 = arith.constant 0 : index
    %c0_18 = arith.constant 0 : index
    %23 = vector.load %arg6[%c0_16, %c0_17, %c0_18] : memref<1x8x32xf32, #tpu.memory_space<vmem>>, vector<1x8x32xf32>
    %24 = vector.shape_cast %23 : vector<1x8x32xf32> to vector<8x32xf32>
    %25 = vector.shape_cast %22 : vector<8x32xf32> to vector<1x8x32xf32>
    tpu.vector_store %arg6[%c0_16, %c0_17, %c0_18], %25 {strides = array<i32>} : memref<1x8x32xf32, #tpu.memory_space<vmem>>, vector<1x8x32xf32>,
    return
  }
  func.func @transform_0(%arg0: i32, %arg1: i32, %arg2: i32) -> (i32, i32, i32, i32) {
    %c0_i32 = arith.constant 0 : i32
    %c0_i32_0 = arith.constant 0 : i32
    return %arg0, %arg2, %arg1, %c0_i32 : i32, i32, i32, i32
  }
  func.func @transform_1(%arg0: i32, %arg1: i32, %arg2: i32) -> (i32, i32, i32, i32) {
    %c0_i32 = arith.constant 0 : i32
    %c0_i32_0 = arith.constant 0 : i32
    %c0_i32_1 = arith.constant 0 : i32
    return %arg0, %c0_i32, %arg1, %c0_i32_0 : i32, i32, i32, i32
  }
  func.func @transform_2(%arg0: i32, %arg1: i32, %arg2: i32) -> (i32, i32, i32, i32) {
    %c0_i32 = arith.constant 0 : i32
    %c0_i32_0 = arith.constant 0 : i32
    %c0_i32_1 = arith.constant 0 : i32
    return %arg0, %c0_i32, %arg1, %c0_i32_0 : i32, i32, i32, i32
  }
  func.func @transform_3(%arg0: i32, %arg1: i32, %arg2: i32) -> (i32, i32, i32) {
    %c0_i32 = arith.constant 0 : i32
    return %arg0, %arg2, %arg1 : i32, i32, i32
  }
}

</mosaic_0001>

<llo_original>
// kernel: tpu_custom_call.1
$region0: #{tpu_custom_call.1}
  #allocation0 [shape = 'u32[]', space=smem, size = 0x4, offset = 0x4, fixed_abs, tag = 'smem constant byte address 0x4 - core index']
  #allocation1 [shape = 'u32[72,128]{1,0:T(1,128)}', space=vmem, size = 0x9000, scoped, tag = 'internal scratch']
  %s0 = inlined_call_operand.hbm [shape: f32[2,8,4,8], index: 0, kind: input, shape index: {}]
  %s1 = inlined_call_operand.hbm [shape: f32[2,8,4,8], index: 1, kind: input, shape index: {}]
  %s2 = inlined_call_operand.hbm [shape: f32[2,8,4,8], index: 2, kind: input, shape index: {}]
  %s3 = inlined_call_operand.hbm [shape: f32[2,8,32], index: 3, kind: output, shape index: {}]
  %s4 = sld [smem:[#allocation0]]
  $region57: #{tpu_custom_call.1} parent=0
    _
  %s6 = ssub.s32 1, %s4
  %s7 = scalar_select 0, %s6, %s4
  $region1: #{tpu_custom_call.1} parent=0
    #allocation2 [shape = 'u8[32768]{0}', space=vmem, size = 0x8000, scoped, tag = 'input window, operand 0']
    #allocation3 [shape = 's32[2]{0}', space=sflag, size = 0x8, scoped, tag = 'scoped memory for tpu_custom_call.1']
    #allocation4 [shape = 's32[2]{0}', space=sflag, size = 0x8, scoped, tag = 'scoped memory for tpu_custom_call.1']
    #allocation5 [shape = 'u8[32768]{0}', space=vmem, size = 0x8000, scoped, tag = 'input window, operand 1']
    #allocation6 [shape = 's32[2]{0}', space=sflag, size = 0x8, scoped, tag = 'scoped memory for tpu_custom_call.1']
    #allocation7 [shape = 'u8[32768]{0}', space=vmem, size = 0x8000, scoped, tag = 'input window, operand 2']
    #allocation8 [shape = 'u8[8192]{0}', space=vmem, size = 0x2000, scoped, tag = 'output window, operand 0']
    %8 = vsyncpa [#allocation3], 0
    %s9 = scalar_lea.sflag [#allocation3], 1
    %10 = vsyncpa %s9, 0
    %11 = vsyncpa [#allocation6], 0
    %s12 = scalar_lea.sflag [#allocation6], 1
    %13 = vsyncpa %s12, 0
    %14 = vsyncpa [#allocation4], 0
    %s15 = scalar_lea.sflag [#allocation4], 1
    %16 = vsyncpa %s15, 0
    loop: start=0, step=1, limit=4
    $region2: #{tpu_custom_call.1} parent=1 // loop_pre_header
      _
    $region3: #{tpu_custom_call.1} parent=1 // loop_header
      %s18 = sphi 0, %s22
      %p19 = scmp.ge.s32.totalorder %s18, 4
      %s25 = sphi 0, %s44
      %s26 = sphi 0, %s40
      %s27 = sphi 0, %s36
      %s28 = sphi 0, %s25
      %s29 = sphi 0, %s26
      %s30 = sphi 0, %s27
      %s31 = sphi 0, %s28
      %s32 = sphi 0, %s29
      %s33 = sphi 0, %s30
      %s51 = sphi 0, %s53
      %s54 = sphi 0, %s51
      %s55 = sphi 0, %s54
      %s71 = sphi 0, %s55
      %s79 = sphi 0, %s81
      %s82 = sphi 0, %s79
      %s83 = sphi 0, %s82
      %s99 = sphi 0, %s83
      %s107 = sphi 0, %s109
      %s110 = sphi 0, %s107
      %s111 = sphi 0, %s110
      %s127 = sphi 0, %s111
      %s137 = sphi 0, %s139
      %s140 = sphi 0, %s137
      %s141 = sphi 0, %s140
      %s157 = sphi 0, %s141
    $region4: #{tpu_custom_call.1} parent=1 // loop_header_branch
      %21 = sbr.rel (%p19) target = $region8
    $region5: #{tpu_custom_call.1} parent=1 // loop_body
      %s23 = ssub.s32 %s18, 1
      %s24 = ssub.s32 %s18, 2
      %s34 = sadd.s32 1, %s27
      %p35 = scmp.ge.s32.totalorder %s34, 1
      %s36 = scalar_select %p35, 0, %s34
      %s37 = sadd.s32 1, %s26
      %s38 = scalar_select %p35, %s37, %s26
      %p39 = scmp.ge.s32.totalorder %s38, 1
      %s40 = scalar_select %p39, 0, %s38
      %s41 = sadd.s32 1, %s25
      %s42 = scalar_select %p39, %s41, %s25
      %p43 = scmp.ge.s32.totalorder %s42, 2
      %s44 = scalar_select %p43, 0, %s42
      %s45 = ssub.s32 %s25, %s44
      %s46 = ssub.s32 %s27, %s36
      %s47 = sor.u32 %s45, %s46
      %s48 = ssub.s32 %s26, %s40
      %s49 = sor.u32 %s47, %s48
      %p50 = scmp.eq.s32.totalorder %s49, 0
      %s52 = sadd.s32 %s51, 1
      %s53 = scalar_select %p50, %s51, %s52
      %p56 = pneg %p50
      %p57 = scmp.eq.s32.totalorder %s18, 1
      %p58 = por %p56, %p57
      %p59 = scmp.ne.s32.totalorder %s51, %s54
      %p60 = scmp.eq.s32.totalorder %s18, 0
      %p61 = por %p59, %p60
      %p62 = scmp.ne.s32.totalorder %s51, %s54
      %p63 = scmp.eq.s32.totalorder %s23, 1
      %p64 = por %p62, %p63
      %p65 = scmp.ne.s32.totalorder %s54, %s55
      %p66 = scmp.eq.s32.totalorder %s23, 0
      %p67 = por %p65, %p66
      %p68 = scmp.ne.s32.totalorder %s54, %s55
      %p69 = scmp.eq.s32.totalorder %s24, 1
      %p70 = por %p68, %p69
      %p72 = scmp.ne.s32.totalorder %s55, %s71
      %p73 = scmp.eq.s32.totalorder %s24, 0
      %p74 = por %p72, %p73
      %s75 = ssub.s32 %s25, %s44
      %s76 = ssub.s32 %s26, %s40
      %s77 = sor.u32 %s75, %s76
      %p78 = scmp.eq.s32.totalorder %s77, 0
      %s80 = sadd.s32 %s79, 1
      %s81 = scalar_select %p78, %s79, %s80
      %p84 = pneg %p78
      %p85 = scmp.eq.s32.totalorder %s18, 1
      %p86 = por %p84, %p85
      %p87 = scmp.ne.s32.totalorder %s79, %s82
      %p88 = scmp.eq.s32.totalorder %s18, 0
      %p89 = por %p87, %p88
      %p90 = scmp.ne.s32.totalorder %s79, %s82
      %p91 = scmp.eq.s32.totalorder %s23, 1
      %p92 = por %p90, %p91
      %p93 = scmp.ne.s32.totalorder %s82, %s83
      %p94 = scmp.eq.s32.totalorder %s23, 0
      %p95 = por %p93, %p94
      %p96 = scmp.ne.s32.totalorder %s82, %s83
      %p97 = scmp.eq.s32.totalorder %s24, 1
      %p98 = por %p96, %p97
      %p100 = scmp.ne.s32.totalorder %s83, %s99
      %p101 = scmp.eq.s32.totalorder %s24, 0
      %p102 = por %p100, %p101
      %s103 = ssub.s32 %s25, %s44
      %s104 = ssub.s32 %s26, %s40
      %s105 = sor.u32 %s103, %s104
      %p106 = scmp.eq.s32.totalorder %s105, 0
      %s108 = sadd.s32 %s107, 1
      %s109 = scalar_select %p106, %s107, %s108
      %p112 = pneg %p106
      %p113 = scmp.eq.s32.totalorder %s18, 1
      %p114 = por %p112, %p113
      %p115 = scmp.ne.s32.totalorder %s107, %s110
      %p116 = scmp.eq.s32.totalorder %s18, 0
      %p117 = por %p115, %p116
      %p118 = scmp.ne.s32.totalorder %s107, %s110
      %p119 = scmp.eq.s32.totalorder %s23, 1
      %p120 = por %p118, %p119
      %p121 = scmp.ne.s32.totalorder %s110, %s111
      %p122 = scmp.eq.s32.totalorder %s23, 0
      %p123 = por %p121, %p122
      %p124 = scmp.ne.s32.totalorder %s110, %s111
      %p125 = scmp.eq.s32.totalorder %s24, 1
      %p126 = por %p124, %p125
      %p128 = scmp.ne.s32.totalorder %s111, %s127
      %p129 = scmp.eq.s32.totalorder %s24, 0
      %p130 = por %p128, %p129
      %s131 = ssub.s32 %s25, %s44
      %s132 = ssub.s32 %s27, %s36
      %s133 = sor.u32 %s131, %s132
      %s134 = ssub.s32 %s26, %s40
      %s135 = sor.u32 %s133, %s134
      %p136 = scmp.eq.s32.totalorder %s135, 0
      %s138 = sadd.s32 %s137, 1
      %s139 = scalar_select %p136, %s137, %s138
      %p142 = pneg %p136
      %p143 = scmp.eq.s32.totalorder %s18, 1
      %p144 = por %p142, %p143
      %p145 = scmp.ne.s32.totalorder %s137, %s140
      %p146 = scmp.eq.s32.totalorder %s18, 0
      %p147 = por %p145, %p146
      %p148 = scmp.ne.s32.totalorder %s137, %s140
      %p149 = scmp.eq.s32.totalorder %s23, 1
      %p150 = por %p148, %p149
      %p151 = scmp.ne.s32.totalorder %s140, %s141
      %p152 = scmp.eq.s32.totalorder %s23, 0
      %p153 = por %p151, %p152
      %p154 = scmp.ne.s32.totalorder %s140, %s141
      %p155 = scmp.eq.s32.totalorder %s24, 1
      %p156 = por %p154, %p155
      %p158 = scmp.ne.s32.totalorder %s141, %s157
      %p159 = scmp.eq.s32.totalorder %s24, 0
      %p160 = por %p158, %p159
      %p161 = scmp.le.s32.totalorder 1, %s18
      %p162 = scmp.lt.s32.totalorder %s18, 3
      %p163 = pnand %p161, %p162
      %p164 = pneg %p163
      // Predicated region
      $region9: #{tpu_custom_call.1} parent=5 // pred_check
        _
      $region10: #{tpu_custom_call.1} parent=5 // pred_check_branch
        %166 = sbr.rel (%p163) target = $region12
      $region11: #{tpu_custom_call.1} parent=5 // pred_region
        %s167 = ssub.s32 %s18, 1
      $region12: #{tpu_custom_call.1} parent=5 // pred_fallthru
        _
      %p168 = scmp.lt.s32.totalorder %s18, 2
      // Predicated region
      $region13: #{tpu_custom_call.1} parent=5 // pred_check
        %p169 = pneg %p168
      $region14: #{tpu_custom_call.1} parent=5 // pred_check_branch
        %171 = sbr.rel (%p169) target = $region16
      $region15: #{tpu_custom_call.1} parent=5 // pred_region
        // Predicated region
        $region17: #{tpu_custom_call.1} parent=15 // pred_check
          %p172 = pneg %p61
        $region18: #{tpu_custom_call.1} parent=15 // pred_check_branch
          %174 = sbr.rel (%p172) target = $region20
        $region19: #{tpu_custom_call.1} parent=15 // pred_region
          %s175 = sand.u32 %s51, 1
          %s176 = scalar_lea.sflag [#allocation3], %s175
          %s177 = sand.u32 %s51, 1
          %s178 = smul.addr %s177, 32
          %s179 = scalar_lea.vmem [#allocation2], %s178
          %s180 = smul.u32 8, %s27
          %182 = vsyncadd %s176, 0
          %s183 = sadd.s32 %s26, %s180
          %s184 = smul.addr %s25, 8
          %s185 = sadd.s32 %s183, %s184
          %s186 = smul.addr %s185, 4
          %s187 = scalar_lea.hbm %s0, %s186
          %s188 = sshll.u32 %s187, 4
          %s189 = int_to_ptr.hbm [resolvable:$true] %s188
          %s190 = sshll.u32 %s179, 4
          %s191 = int_to_ptr.vmem [resolvable:$true] %s190
          %196 = dma.hbm_to_vmem [thread:$0]  %s189, 512, %s191, %s176, 64, 64, 4
        $region20: #{tpu_custom_call.1} parent=15 // pred_fallthru
          _
        // Predicated region
        $region21: #{tpu_custom_call.1} parent=15 // pred_check
          %p197 = pneg %p89
        $region22: #{tpu_custom_call.1} parent=15 // pred_check_branch
          %199 = sbr.rel (%p197) target = $region24
        $region23: #{tpu_custom_call.1} parent=15 // pred_region
          %s200 = sand.u32 %s18, 1
          %s201 = scalar_lea.sflag [#allocation6], %s200
          %s202 = sand.u32 %s79, 1
          %s203 = smul.addr %s202, 32
          %s204 = scalar_lea.vmem [#allocation5], %s203
          %206 = vsyncadd %s201, 0
          %s207 = smul.addr %s25, 8
          %s208 = sadd.s32 %s26, %s207
          %s209 = smul.addr %s208, 4
          %s210 = scalar_lea.hbm %s1, %s209
          %s211 = sshll.u32 %s210, 4
          %s212 = int_to_ptr.hbm [resolvable:$true] %s211
          %s213 = sshll.u32 %s204, 4
          %s214 = int_to_ptr.vmem [resolvable:$true] %s213
          %219 = dma.hbm_to_vmem [thread:$0]  %s212, 512, %s214, %s201, 64, 64, 4
        $region24: #{tpu_custom_call.1} parent=15 // pred_fallthru
          _
        // Predicated region
        $region25: #{tpu_custom_call.1} parent=15 // pred_check
          %p220 = pneg %p117
        $region26: #{tpu_custom_call.1} parent=15 // pred_check_branch
          %222 = sbr.rel (%p220) target = $region28
        $region27: #{tpu_custom_call.1} parent=15 // pred_region
          %s223 = sand.u32 %s18, 1
          %s224 = scalar_lea.sflag [#allocation6], %s223
          %s225 = sand.u32 %s107, 1
          %s226 = smul.addr %s225, 32
          %s227 = scalar_lea.vmem [#allocation7], %s226
          %229 = vsyncadd %s224, 0
          %s230 = smul.addr %s25, 8
          %s231 = sadd.s32 %s26, %s230
          %s232 = smul.addr %s231, 4
          %s233 = scalar_lea.hbm %s2, %s232
          %s234 = sshll.u32 %s233, 4
          %s235 = int_to_ptr.hbm [resolvable:$true] %s234
          %s236 = sshll.u32 %s227, 4
          %s237 = int_to_ptr.vmem [resolvable:$true] %s236
          %242 = dma.hbm_to_vmem [thread:$0]  %s235, 512, %s237, %s224, 64, 64, 4
        $region28: #{tpu_custom_call.1} parent=15 // pred_fallthru
          _
      $region16: #{tpu_custom_call.1} parent=5 // pred_fallthru
        _
      %p243 = scmp.le.s32.totalorder 1, %s18
      %p244 = scmp.lt.s32.totalorder %s18, 3
      %p245 = pnand %p243, %p244
      %p246 = pneg %p245
      // Predicated region
      $region29: #{tpu_custom_call.1} parent=5 // pred_check
        _
      $region30: #{tpu_custom_call.1} parent=5 // pred_check_branch
        %248 = sbr.rel (%p245) target = $region32
      $region31: #{tpu_custom_call.1} parent=5 // pred_region
        %s249 = ssub.s32 %s18, 1
        %s250 = sand.u32 %s54, 1
        %s251 = scalar_lea.sflag [#allocation3], %s250
        %s252 = sand.u32 %s54, 1
        %s253 = smul.addr %s252, 32
        %s254 = scalar_lea.vmem [#allocation2], %s253
        // Predicated region
        $region33: #{tpu_custom_call.1} parent=31 // pred_check
          %p255 = pneg %p67
        $region34: #{tpu_custom_call.1} parent=31 // pred_check_branch
          %257 = sbr.rel (%p255) target = $region36
        $region35: #{tpu_custom_call.1} parent=31 // pred_region
          %259 = dma.done %s251, 512
        $region36: #{tpu_custom_call.1} parent=31 // pred_fallthru
          _
        %s260 = sand.u32 %s23, 1
        %s261 = scalar_lea.sflag [#allocation6], %s260
        %s262 = sand.u32 %s82, 1
        %s263 = smul.addr %s262, 32
        %s264 = scalar_lea.vmem [#allocation5], %s263
        // Predicated region
        $region37: #{tpu_custom_call.1} parent=31 // pred_check
          %p265 = pneg %p95
        $region38: #{tpu_custom_call.1} parent=31 // pred_check_branch
          %267 = sbr.rel (%p265) target = $region40
        $region39: #{tpu_custom_call.1} parent=31 // pred_region
          %269 = dma.done %s261, 512
        $region40: #{tpu_custom_call.1} parent=31 // pred_fallthru
          _
        %s270 = sand.u32 %s23, 1
        %s271 = scalar_lea.sflag [#allocation6], %s270
        %s272 = sand.u32 %s110, 1
        %s273 = smul.addr %s272, 32
        %s274 = scalar_lea.vmem [#allocation7], %s273
        // Predicated region
        $region41: #{tpu_custom_call.1} parent=31 // pred_check
          %p275 = pneg %p123
        $region42: #{tpu_custom_call.1} parent=31 // pred_check_branch
          %277 = sbr.rel (%p275) target = $region44
        $region43: #{tpu_custom_call.1} parent=31 // pred_region
          %279 = dma.done %s271, 512
        $region44: #{tpu_custom_call.1} parent=31 // pred_fallthru
          _
        %s280 = sand.u32 %s54, 1
        %s281 = scalar_lea.sflag [#allocation3], %s280
        %s282 = sand.u32 %s54, 1
        %s283 = smul.addr %s282, 32
        %s284 = scalar_lea.vmem [#allocation2], %s283
        %p285 = pneg %p67
        %p286 = pneg %p64
        %s287 = sand.u32 %s23, 1
        %s288 = scalar_lea.sflag [#allocation6], %s287
        %s289 = sand.u32 %s82, 1
        %s290 = smul.addr %s289, 32
        %s291 = scalar_lea.vmem [#allocation5], %s290
        %p292 = pneg %p95
        %p293 = pneg %p92
        %s294 = sand.u32 %s23, 1
        %s295 = scalar_lea.sflag [#allocation6], %s294
        %s296 = sand.u32 %s110, 1
        %s297 = smul.addr %s296, 32
        %s298 = scalar_lea.vmem [#allocation7], %s297
        %p299 = pneg %p123
        %p300 = pneg %p120
        %p301 = pneg %p153
        %p302 = pneg %p150
        %s303 = sand.u32 %s140, 1
        %s304 = scalar_lea.sflag [#allocation4], %s303
        %s305 = sand.u32 %s140, 1
        %s306 = smul.addr %s305, 8
        %s307 = scalar_lea.vmem [#allocation8], %s306
        %s308 = smul.u32 8, %s30
        %v309 = vld [vmem:[%s254] sm:$0xf]
        %v310 = vld [vmem:[%s254 + $0x4] sm:$0xf]
        %v311 = vld [vmem:[%s254 + $0x8] sm:$0xf]
        %v312 = vld [vmem:[%s254 + $0xc] sm:$0xf]
        %v313 = vld [vmem:[%s254 + $0x10] sm:$0xf]
        %v314 = vld [vmem:[%s254 + $0x14] sm:$0xf]
        %v315 = vld [vmem:[%s254 + $0x18] sm:$0xf]
        %v316 = vld [vmem:[%s254 + $0x1c] sm:$0xf]
        %v317 = vmul.f32 %v309, 0.35355338
        %v318 = vmul.f32 %v310, 0.35355338
        %v319 = vmul.f32 %v311, 0.35355338
        %v320 = vmul.f32 %v312, 0.35355338
        %v321 = vmul.f32 %v313, 0.35355338
        %v322 = vmul.f32 %v314, 0.35355338
        %v323 = vmul.f32 %v315, 0.35355338
        %v324 = vmul.f32 %v316, 0.35355338
        %v325 = vld [vmem:[%s264] sm:$0xf]
        %v326 = vld [vmem:[%s264 + $0x4] sm:$0xf]
        %v327 = vld [vmem:[%s264 + $0x8] sm:$0xf]
        %v328 = vld [vmem:[%s264 + $0xc] sm:$0xf]
        %v329 = vld [vmem:[%s264 + $0x10] sm:$0xf]
        %v330 = vld [vmem:[%s264 + $0x14] sm:$0xf]
        %v331 = vld [vmem:[%s264 + $0x18] sm:$0xf]
        %v332 = vld [vmem:[%s264 + $0x1c] sm:$0xf]
        %v333 = vld [vmem:[%s274] sm:$0xf]
        %v334 = vld [vmem:[%s274 + $0x4] sm:$0xf]
        %v335 = vld [vmem:[%s274 + $0x8] sm:$0xf]
        %v336 = vld [vmem:[%s274 + $0xc] sm:$0xf]
        %v337 = vld [vmem:[%s274 + $0x10] sm:$0xf]
        %v338 = vld [vmem:[%s274 + $0x14] sm:$0xf]
        %v339 = vld [vmem:[%s274 + $0x18] sm:$0xf]
        %v340 = vld [vmem:[%s274 + $0x1c] sm:$0xf]
        %v341 = vrot.slane %v319, 4
        %vm342 = vcmask 1047556
        %v343 = vsel %vm342, %v341, %v317
        %v345 = vunpack.c.l.s4 1983009808
        %v346 = vunpack.c.0.s8 %v345
        %v347 = vperm.slane %v343, %v346
        %v348 = vrot.slane %v320, 4
        %v349 = vsel %vm342, %v348, %v318
        %v351 = vunpack.c.l.s4 1983009808
        %v352 = vunpack.c.0.s8 %v351
        %v353 = vperm.slane %v349, %v352
        %v354 = vrot.slane %v323, 4
        %v355 = vsel %vm342, %v354, %v321
        %v357 = vunpack.c.l.s4 1983009808
        %v358 = vunpack.c.0.s8 %v357
        %v359 = vperm.slane %v355, %v358
        %v360 = vrot.slane %v324, 4
        %v361 = vsel %vm342, %v360, %v322
        %v363 = vunpack.c.l.s4 1983009808
        %v364 = vunpack.c.0.s8 %v363
        %v365 = vperm.slane %v361, %v364
        %v366 = vrot.slane %v353, 4
        %v367 = vsel %vm342, %v366, %v347
        %v368 = vrot.slane %v347, 4
        %v369 = vsel %vm342, %v353, %v368
        %v371 = vunpack.c.l.s4 1934713408
        %v372 = vunpack.c.0.s8 %v371
        %v373 = vperm.slane %v367, %v372
        %v375 = vunpack.c.l.s4 1934713408
        %v376 = vunpack.c.0.s8 %v375
        %v377 = vperm.slane %v369, %v376
        %v378 = vrot.slane %v365, 4
        %v379 = vsel %vm342, %v378, %v359
        %v380 = vrot.slane %v359, 4
        %v381 = vsel %vm342, %v365, %v380
        %v383 = vunpack.c.l.s4 1934713408
        %v384 = vunpack.c.0.s8 %v383
        %v385 = vperm.slane %v379, %v384
        %v387 = vunpack.c.l.s4 1934713408
        %v388 = vunpack.c.0.s8 %v387
        %v389 = vperm.slane %v381, %v388
        %v390 = vrot.slane %v385, 4
        %v391 = vsel %vm342, %v390, %v373
        %v392 = vrot.slane %v373, 4
        %v393 = vsel %vm342, %v385, %v392
        %v394 = vrot.slane %v389, 4
        %v395 = vsel %vm342, %v394, %v377
        %v396 = vrot.slane %v377, 4
        %v397 = vsel %vm342, %v389, %v396
        %398 = vxpose.xlu0.b32.start [1/16] %v325, 128
        %399 = vxpose.xlu0.b32.cont [2/16] 0.0, 128
        %400 = vxpose.xlu0.b32.cont [3/16] 0.0, 128
        %401 = vxpose.xlu0.b32.cont [4/16] 0.0, 128
        %402 = vxpose.xlu0.b32.cont [5/16] 0.0, 128
        %403 = vxpose.xlu0.b32.cont [6/16] 0.0, 128
        %404 = vxpose.xlu0.b32.cont [7/16] 0.0, 128
        %405 = vxpose.xlu0.b32.cont [8/16] 0.0, 128
        %406 = vxpose.xlu0.b32.cont [9/16] 0.0, 128
        %407 = vxpose.xlu0.b32.cont [10/16] 0.0, 128
        %408 = vxpose.xlu0.b32.cont [11/16] 0.0, 128
        %409 = vxpose.xlu0.b32.cont [12/16] 0.0, 128
        %410 = vxpose.xlu0.b32.cont [13/16] 0.0, 128
        %411 = vxpose.xlu0.b32.cont [14/16] 0.0, 128
        %412 = vxpose.xlu0.b32.cont [15/16] 0.0, 128
        %413 = vxpose.xlu0.b32.end [16/16] 0.0, 128
        %v414 = vpop.trf.xlu0
        %v415 = vpop.trf.xlu0
        %v416 = vpop.trf.xlu0
        %v417 = vpop.trf.xlu0
        %v418 = vpop.trf.xlu0
        %v419 = vpop.trf.xlu0
        %v420 = vpop.trf.xlu0
        %v421 = vpop.trf.xlu0
        %v422 = vpop.trf.xlu0
        %v423 = vpop.trf.xlu0
        %v424 = vpop.trf.xlu0
        %v425 = vpop.trf.xlu0
        %v426 = vpop.trf.xlu0
        %v427 = vpop.trf.xlu0
        %v428 = vpop.trf.xlu0
        %v429 = vpop.trf.xlu0
        %430 = vxpose.xlu0.b32.start [1/16] %v326, 128
        %431 = vxpose.xlu0.b32.cont [2/16] 0.0, 128
        %432 = vxpose.xlu0.b32.cont [3/16] 0.0, 128
        %433 = vxpose.xlu0.b32.cont [4/16] 0.0, 128
        %434 = vxpose.xlu0.b32.cont [5/16] 0.0, 128
        %435 = vxpose.xlu0.b32.cont [6/16] 0.0, 128
        %436 = vxpose.xlu0.b32.cont [7/16] 0.0, 128
        %437 = vxpose.xlu0.b32.cont [8/16] 0.0, 128
        %438 = vxpose.xlu0.b32.cont [9/16] 0.0, 128
        %439 = vxpose.xlu0.b32.cont [10/16] 0.0, 128
        %440 = vxpose.xlu0.b32.cont [11/16] 0.0, 128
        %441 = vxpose.xlu0.b32.cont [12/16] 0.0, 128
        %442 = vxpose.xlu0.b32.cont [13/16] 0.0, 128
        %443 = vxpose.xlu0.b32.cont [14/16] 0.0, 128
        %444 = vxpose.xlu0.b32.cont [15/16] 0.0, 128
        %445 = vxpose.xlu0.b32.end [16/16] 0.0, 128
        %v446 = vpop.trf.xlu0
        %v447 = vpop.trf.xlu0
        %v448 = vpop.trf.xlu0
        %v449 = vpop.trf.xlu0
        %v450 = vpop.trf.xlu0
        %v451 = vpop.trf.xlu0
        %v452 = vpop.trf.xlu0
        %v453 = vpop.trf.xlu0
        %v454 = vpop.trf.xlu0
        %v455 = vpop.trf.xlu0
        %v456 = vpop.trf.xlu0
        %v457 = vpop.trf.xlu0
        %v458 = vpop.trf.xlu0
        %v459 = vpop.trf.xlu0
        %v460 = vpop.trf.xlu0
        %v461 = vpop.trf.xlu0
        %462 = vxpose.xlu0.b32.start [1/16] %v327, 128
        %463 = vxpose.xlu0.b32.cont [2/16] 0.0, 128
        %464 = vxpose.xlu0.b32.cont [3/16] 0.0, 128
        %465 = vxpose.xlu0.b32.cont [4/16] 0.0, 128
        %466 = vxpose.xlu0.b32.cont [5/16] 0.0, 128
        %467 = vxpose.xlu0.b32.cont [6/16] 0.0, 128
        %468 = vxpose.xlu0.b32.cont [7/16] 0.0, 128
        %469 = vxpose.xlu0.b32.cont [8/16] 0.0, 128
        %470 = vxpose.xlu0.b32.cont [9/16] 0.0, 128
        %471 = vxpose.xlu0.b32.cont [10/16] 0.0, 128
        %472 = vxpose.xlu0.b32.cont [11/16] 0.0, 128
        %473 = vxpose.xlu0.b32.cont [12/16] 0.0, 128
        %474 = vxpose.xlu0.b32.cont [13/16] 0.0, 128
        %475 = vxpose.xlu0.b32.cont [14/16] 0.0, 128
        %476 = vxpose.xlu0.b32.cont [15/16] 0.0, 128
        %477 = vxpose.xlu0.b32.end [16/16] 0.0, 128
        %v478 = vpop.trf.xlu0
        %v479 = vpop.trf.xlu0
        %v480 = vpop.trf.xlu0
        %v481 = vpop.trf.xlu0
        %v482 = vpop.trf.xlu0
        %v483 = vpop.trf.xlu0
        %v484 = vpop.trf.xlu0
        %v485 = vpop.trf.xlu0
        %v486 = vpop.trf.xlu0
        %v487 = vpop.trf.xlu0
        %v488 = vpop.trf.xlu0
        %v489 = vpop.trf.xlu0
        %v490 = vpop.trf.xlu0
        %v491 = vpop.trf.xlu0
        %v492 = vpop.trf.xlu0
        %v493 = vpop.trf.xlu0
        %494 = vxpose.xlu0.b32.start [1/16] %v328, 128
        %495 = vxpose.xlu0.b32.cont [2/16] 0.0, 128
        %496 = vxpose.xlu0.b32.cont [3/16] 0.0, 128
        %497 = vxpose.xlu0.b32.cont [4/16] 0.0, 128
        %498 = vxpose.xlu0.b32.cont [5/16] 0.0, 128
        %499 = vxpose.xlu0.b32.cont [6/16] 0.0, 128
        %500 = vxpose.xlu0.b32.cont [7/16] 0.0, 128
        %501 = vxpose.xlu0.b32.cont [8/16] 0.0, 128
        %502 = vxpose.xlu0.b32.cont [9/16] 0.0, 128
        %503 = vxpose.xlu0.b32.cont [10/16] 0.0, 128
        %504 = vxpose.xlu0.b32.cont [11/16] 0.0, 128
        %505 = vxpose.xlu0.b32.cont [12/16] 0.0, 128
        %506 = vxpose.xlu0.b32.cont [13/16] 0.0, 128
        %507 = vxpose.xlu0.b32.cont [14/16] 0.0, 128
        %508 = vxpose.xlu0.b32.cont [15/16] 0.0, 128
        %509 = vxpose.xlu0.b32.end [16/16] 0.0, 128
        %v510 = vpop.trf.xlu0
        %v511 = vpop.trf.xlu0
        %v512 = vpop.trf.xlu0
        %v513 = vpop.trf.xlu0
        %v514 = vpop.trf.xlu0
        %v515 = vpop.trf.xlu0
        %v516 = vpop.trf.xlu0
        %v517 = vpop.trf.xlu0
        %v518 = vpop.trf.xlu0
        %v519 = vpop.trf.xlu0
        %v520 = vpop.trf.xlu0
        %v521 = vpop.trf.xlu0
        %v522 = vpop.trf.xlu0
        %v523 = vpop.trf.xlu0
        %v524 = vpop.trf.xlu0
        %v525 = vpop.trf.xlu0
        %526 = vxpose.xlu0.b32.start [1/16] %v329, 128
        %527 = vxpose.xlu0.b32.cont [2/16] 0.0, 128
        %528 = vxpose.xlu0.b32.cont [3/16] 0.0, 128
        %529 = vxpose.xlu0.b32.cont [4/16] 0.0, 128
        %530 = vxpose.xlu0.b32.cont [5/16] 0.0, 128
        %531 = vxpose.xlu0.b32.cont [6/16] 0.0, 128
        %532 = vxpose.xlu0.b32.cont [7/16] 0.0, 128
        %533 = vxpose.xlu0.b32.cont [8/16] 0.0, 128
        %534 = vxpose.xlu0.b32.cont [9/16] 0.0, 128
        %535 = vxpose.xlu0.b32.cont [10/16] 0.0, 128
        %536 = vxpose.xlu0.b32.cont [11/16] 0.0, 128
        %537 = vxpose.xlu0.b32.cont [12/16] 0.0, 128
        %538 = vxpose.xlu0.b32.cont [13/16] 0.0, 128
        %539 = vxpose.xlu0.b32.cont [14/16] 0.0, 128
        %540 = vxpose.xlu0.b32.cont [15/16] 0.0, 128
        %541 = vxpose.xlu0.b32.end [16/16] 0.0, 128
        %v542 = vpop.trf.xlu0
        %v543 = vpop.trf.xlu0
        %v544 = vpop.trf.xlu0
        %v545 = vpop.trf.xlu0
        %v546 = vpop.trf.xlu0
        %v547 = vpop.trf.xlu0
        %v548 = vpop.trf.xlu0
        %v549 = vpop.trf.xlu0
        %v550 = vpop.trf.xlu0
        %v551 = vpop.trf.xlu0
        %v552 = vpop.trf.xlu0
        %v553 = vpop.trf.xlu0
        %v554 = vpop.trf.xlu0
        %v555 = vpop.trf.xlu0
        %v556 = vpop.trf.xlu0
        %v557 = vpop.trf.xlu0
        %558 = vxpose.xlu0.b32.start [1/16] %v330, 128
        %559 = vxpose.xlu0.b32.cont [2/16] 0.0, 128
        %560 = vxpose.xlu0.b32.cont [3/16] 0.0, 128
        %561 = vxpose.xlu0.b32.cont [4/16] 0.0, 128
        %562 = vxpose.xlu0.b32.cont [5/16] 0.0, 128
        %563 = vxpose.xlu0.b32.cont [6/16] 0.0, 128
        %564 = vxpose.xlu0.b32.cont [7/16] 0.0, 128
        %565 = vxpose.xlu0.b32.cont [8/16] 0.0, 128
        %566 = vxpose.xlu0.b32.cont [9/16] 0.0, 128
        %567 = vxpose.xlu0.b32.cont [10/16] 0.0, 128
        %568 = vxpose.xlu0.b32.cont [11/16] 0.0, 128
        %569 = vxpose.xlu0.b32.cont [12/16] 0.0, 128
        %570 = vxpose.xlu0.b32.cont [13/16] 0.0, 128
        %571 = vxpose.xlu0.b32.cont [14/16] 0.0, 128
        %572 = vxpose.xlu0.b32.cont [15/16] 0.0, 128
        %573 = vxpose.xlu0.b32.end [16/16] 0.0, 128
        %v574 = vpop.trf.xlu0
        %v575 = vpop.trf.xlu0
        %v576 = vpop.trf.xlu0
        %v577 = vpop.trf.xlu0
        %v578 = vpop.trf.xlu0
        %v579 = vpop.trf.xlu0
        %v580 = vpop.trf.xlu0
        %v581 = vpop.trf.xlu0
        %v582 = vpop.trf.xlu0
        %v583 = vpop.trf.xlu0
        %v584 = vpop.trf.xlu0
        %v585 = vpop.trf.xlu0
        %v586 = vpop.trf.xlu0
        %v587 = vpop.trf.xlu0
        %v588 = vpop.trf.xlu0
        %v589 = vpop.trf.xlu0
        %590 = vxpose.xlu0.b32.start [1/16] %v331, 128
        %591 = vxpose.xlu0.b32.cont [2/16] 0.0, 128
        %592 = vxpose.xlu0.b32.cont [3/16] 0.0, 128
        %593 = vxpose.xlu0.b32.cont [4/16] 0.0, 128
        %594 = vxpose.xlu0.b32.cont [5/16] 0.0, 128
        %595 = vxpose.xlu0.b32.cont [6/16] 0.0, 128
        %596 = vxpose.xlu0.b32.cont [7/16] 0.0, 128
        %597 = vxpose.xlu0.b32.cont [8/16] 0.0, 128
        %598 = vxpose.xlu0.b32.cont [9/16] 0.0, 128
        %599 = vxpose.xlu0.b32.cont [10/16] 0.0, 128
        %600 = vxpose.xlu0.b32.cont [11/16] 0.0, 128
        %601 = vxpose.xlu0.b32.cont [12/16] 0.0, 128
        %602 = vxpose.xlu0.b32.cont [13/16] 0.0, 128
        %603 = vxpose.xlu0.b32.cont [14/16] 0.0, 128
        %604 = vxpose.xlu0.b32.cont [15/16] 0.0, 128
        %605 = vxpose.xlu0.b32.end [16/16] 0.0, 128
        %v606 = vpop.trf.xlu0
        %v607 = vpop.trf.xlu0
        %v608 = vpop.trf.xlu0
        %v609 = vpop.trf.xlu0
        %v610 = vpop.trf.xlu0
        %v611 = vpop.trf.xlu0
        %v612 = vpop.trf.xlu0
        %v613 = vpop.trf.xlu0
        %v614 = vpop.trf.xlu0
        %v615 = vpop.trf.xlu0
        %v616 = vpop.trf.xlu0
        %v617 = vpop.trf.xlu0
        %v618 = vpop.trf.xlu0
        %v619 = vpop.trf.xlu0
        %v620 = vpop.trf.xlu0
        %v621 = vpop.trf.xlu0
        %622 = vxpose.xlu0.b32.start [1/16] %v332, 128
        %623 = vxpose.xlu0.b32.cont [2/16] 0.0, 128
        %624 = vxpose.xlu0.b32.cont [3/16] 0.0, 128
        %625 = vxpose.xlu0.b32.cont [4/16] 0.0, 128
        %626 = vxpose.xlu0.b32.cont [5/16] 0.0, 128
        %627 = vxpose.xlu0.b32.cont [6/16] 0.0, 128
        %628 = vxpose.xlu0.b32.cont [7/16] 0.0, 128
        %629 = vxpose.xlu0.b32.cont [8/16] 0.0, 128
        %630 = vxpose.xlu0.b32.cont [9/16] 0.0, 128
        %631 = vxpose.xlu0.b32.cont [10/16] 0.0, 128
        %632 = vxpose.xlu0.b32.cont [11/16] 0.0, 128
        %633 = vxpose.xlu0.b32.cont [12/16] 0.0, 128
        %634 = vxpose.xlu0.b32.cont [13/16] 0.0, 128
        %635 = vxpose.xlu0.b32.cont [14/16] 0.0, 128
        %636 = vxpose.xlu0.b32.cont [15/16] 0.0, 128
        %637 = vxpose.xlu0.b32.end [16/16] 0.0, 128
        %v638 = vpop.trf.xlu0
        %v639 = vpop.trf.xlu0
        %v640 = vpop.trf.xlu0
        %v641 = vpop.trf.xlu0
        %v642 = vpop.trf.xlu0
        %v643 = vpop.trf.xlu0
        %v644 = vpop.trf.xlu0
        %v645 = vpop.trf.xlu0
        %v646 = vpop.trf.xlu0
        %v647 = vpop.trf.xlu0
        %v648 = vpop.trf.xlu0
        %v649 = vpop.trf.xlu0
        %v650 = vpop.trf.xlu0
        %v651 = vpop.trf.xlu0
        %v652 = vpop.trf.xlu0
        %v653 = vpop.trf.xlu0
        %v654 = vrot.slane %v478, 4
        %v655 = vsel %vm342, %v654, %v414
        %v656 = vrot.slane %v414, 4
        %v657 = vsel %vm342, %v478, %v656
        %v659 = vunpack.c.l.s4 1983009808
        %v660 = vunpack.c.0.s8 %v659
        %v661 = vperm.slane %v655, %v660
        %v663 = vunpack.c.l.s4 1983009808
        %v664 = vunpack.c.0.s8 %v663
        %v665 = vperm.slane %v657, %v664
        %v666 = vrot.slane %v510, 4
        %v667 = vsel %vm342, %v666, %v446
        %v668 = vrot.slane %v446, 4
        %v669 = vsel %vm342, %v510, %v668
        %v671 = vunpack.c.l.s4 1983009808
        %v672 = vunpack.c.0.s8 %v671
        %v673 = vperm.slane %v667, %v672
        %v675 = vunpack.c.l.s4 1983009808
        %v676 = vunpack.c.0.s8 %v675
        %v677 = vperm.slane %v669, %v676
        %v678 = vrot.slane %v606, 4
        %v679 = vsel %vm342, %v678, %v542
        %v680 = vrot.slane %v542, 4
        %v681 = vsel %vm342, %v606, %v680
        %v683 = vunpack.c.l.s4 1983009808
        %v684 = vunpack.c.0.s8 %v683
        %v685 = vperm.slane %v679, %v684
        %v687 = vunpack.c.l.s4 1983009808
        %v688 = vunpack.c.0.s8 %v687
        %v689 = vperm.slane %v681, %v688
        %v690 = vrot.slane %v638, 4
        %v691 = vsel %vm342, %v690, %v574
        %v692 = vrot.slane %v574, 4
        %v693 = vsel %vm342, %v638, %v692
        %v695 = vunpack.c.l.s4 1983009808
        %v696 = vunpack.c.0.s8 %v695
        %v697 = vperm.slane %v691, %v696
        %v699 = vunpack.c.l.s4 1983009808
        %v700 = vunpack.c.0.s8 %v699
        %v701 = vperm.slane %v693, %v700
        %v702 = vrot.slane %v673, 4
        %v703 = vsel %vm342, %v702, %v661
        %v704 = vrot.slane %v661, 4
        %v705 = vsel %vm342, %v673, %v704
        %v707 = vunpack.c.l.s4 1934713408
        %v708 = vunpack.c.0.s8 %v707
        %v709 = vperm.slane %v703, %v708
        %v711 = vunpack.c.l.s4 1934713408
        %v712 = vunpack.c.0.s8 %v711
        %v713 = vperm.slane %v705, %v712
        %v714 = vrot.slane %v677, 4
        %v715 = vsel %vm342, %v714, %v665
        %v716 = vrot.slane %v665, 4
        %v717 = vsel %vm342, %v677, %v716
        %v719 = vunpack.c.l.s4 1934713408
        %v720 = vunpack.c.0.s8 %v719
        %v721 = vperm.slane %v715, %v720
        %v723 = vunpack.c.l.s4 1934713408
        %v724 = vunpack.c.0.s8 %v723
        %v725 = vperm.slane %v717, %v724
        %v726 = vrot.slane %v697, 4
        %v727 = vsel %vm342, %v726, %v685
        %v728 = vrot.slane %v685, 4
        %v729 = vsel %vm342, %v697, %v728
        %v731 = vunpack.c.l.s4 1934713408
        %v732 = vunpack.c.0.s8 %v731
        %v733 = vperm.slane %v727, %v732
        %v735 = vunpack.c.l.s4 1934713408
        %v736 = vunpack.c.0.s8 %v735
        %v737 = vperm.slane %v729, %v736
        %v738 = vrot.slane %v701, 4
        %v739 = vsel %vm342, %v738, %v689
        %v740 = vrot.slane %v689, 4
        %v741 = vsel %vm342, %v701, %v740
        %v743 = vunpack.c.l.s4 1934713408
        %v744 = vunpack.c.0.s8 %v743
        %v745 = vperm.slane %v739, %v744
        %v747 = vunpack.c.l.s4 1934713408
        %v748 = vunpack.c.0.s8 %v747
        %v749 = vperm.slane %v741, %v748
        %v750 = vrot.slane %v733, 4
        %v751 = vsel %vm342, %v750, %v709
        %v752 = vrot.slane %v709, 4
        %v753 = vsel %vm342, %v733, %v752
        %v754 = vrot.slane %v737, 4
        %v755 = vsel %vm342, %v754, %v713
        %v756 = vrot.slane %v713, 4
        %v757 = vsel %vm342, %v737, %v756
        %v758 = vrot.slane %v745, 4
        %v759 = vsel %vm342, %v758, %v721
        %v760 = vrot.slane %v721, 4
        %v761 = vsel %vm342, %v745, %v760
        %v762 = vrot.slane %v749, 4
        %v763 = vsel %vm342, %v762, %v725
        %v764 = vrot.slane %v725, 4
        %v765 = vsel %vm342, %v749, %v764
        %766 = vxpose.xlu0.b32.start [1/16] %v751, 128
        %767 = vxpose.xlu0.b32.cont [2/16] 0.0, 128
        %768 = vxpose.xlu0.b32.cont [3/16] 0.0, 128
        %769 = vxpose.xlu0.b32.cont [4/16] 0.0, 128
        %770 = vxpose.xlu0.b32.cont [5/16] 0.0, 128
        %771 = vxpose.xlu0.b32.cont [6/16] 0.0, 128
        %772 = vxpose.xlu0.b32.cont [7/16] 0.0, 128
        %773 = vxpose.xlu0.b32.cont [8/16] 0.0, 128
        %774 = vxpose.xlu0.b32.cont [9/16] 0.0, 128
        %775 = vxpose.xlu0.b32.cont [10/16] 0.0, 128
        %776 = vxpose.xlu0.b32.cont [11/16] 0.0, 128
        %777 = vxpose.xlu0.b32.cont [12/16] 0.0, 128
        %778 = vxpose.xlu0.b32.cont [13/16] 0.0, 128
        %779 = vxpose.xlu0.b32.cont [14/16] 0.0, 128
        %780 = vxpose.xlu0.b32.cont [15/16] 0.0, 128
        %781 = vxpose.xlu0.b32.end [16/16] 0.0, 128
        %v782 = vpop.trf.xlu0
        %v783 = vpop.trf.xlu0
        %v784 = vpop.trf.xlu0
        %v785 = vpop.trf.xlu0
        %v786 = vpop.trf.xlu0
        %v787 = vpop.trf.xlu0
        %v788 = vpop.trf.xlu0
        %v789 = vpop.trf.xlu0
        %v790 = vpop.trf.xlu0
        %v791 = vpop.trf.xlu0
        %v792 = vpop.trf.xlu0
        %v793 = vpop.trf.xlu0
        %v794 = vpop.trf.xlu0
        %v795 = vpop.trf.xlu0
        %v796 = vpop.trf.xlu0
        %v797 = vpop.trf.xlu0
        %798 = vxpose.xlu0.b32.start [1/16] %v753, 128
        %799 = vxpose.xlu0.b32.cont [2/16] 0.0, 128
        %800 = vxpose.xlu0.b32.cont [3/16] 0.0, 128
        %801 = vxpose.xlu0.b32.cont [4/16] 0.0, 128
        %802 = vxpose.xlu0.b32.cont [5/16] 0.0, 128
        %803 = vxpose.xlu0.b32.cont [6/16] 0.0, 128
        %804 = vxpose.xlu0.b32.cont [7/16] 0.0, 128
        %805 = vxpose.xlu0.b32.cont [8/16] 0.0, 128
        %806 = vxpose.xlu0.b32.cont [9/16] 0.0, 128
        %807 = vxpose.xlu0.b32.cont [10/16] 0.0, 128
        %808 = vxpose.xlu0.b32.cont [11/16] 0.0, 128
        %809 = vxpose.xlu0.b32.cont [12/16] 0.0, 128
        %810 = vxpose.xlu0.b32.cont [13/16] 0.0, 128
        %811 = vxpose.xlu0.b32.cont [14/16] 0.0, 128
        %812 = vxpose.xlu0.b32.cont [15/16] 0.0, 128
        %813 = vxpose.xlu0.b32.end [16/16] 0.0, 128
        %v814 = vpop.trf.xlu0
        %v815 = vpop.trf.xlu0
        %v816 = vpop.trf.xlu0
        %v817 = vpop.trf.xlu0
        %v818 = vpop.trf.xlu0
        %v819 = vpop.trf.xlu0
        %v820 = vpop.trf.xlu0
        %v821 = vpop.trf.xlu0
        %v822 = vpop.trf.xlu0
        %v823 = vpop.trf.xlu0
        %v824 = vpop.trf.xlu0
        %v825 = vpop.trf.xlu0
        %v826 = vpop.trf.xlu0
        %v827 = vpop.trf.xlu0
        %v828 = vpop.trf.xlu0
        %v829 = vpop.trf.xlu0
        %830 = vxpose.xlu0.b32.start [1/16] %v755, 128
        %831 = vxpose.xlu0.b32.cont [2/16] 0.0, 128
        %832 = vxpose.xlu0.b32.cont [3/16] 0.0, 128
        %833 = vxpose.xlu0.b32.cont [4/16] 0.0, 128
        %834 = vxpose.xlu0.b32.cont [5/16] 0.0, 128
        %835 = vxpose.xlu0.b32.cont [6/16] 0.0, 128
        %836 = vxpose.xlu0.b32.cont [7/16] 0.0, 128
        %837 = vxpose.xlu0.b32.cont [8/16] 0.0, 128
        %838 = vxpose.xlu0.b32.cont [9/16] 0.0, 128
        %839 = vxpose.xlu0.b32.cont [10/16] 0.0, 128
        %840 = vxpose.xlu0.b32.cont [11/16] 0.0, 128
        %841 = vxpose.xlu0.b32.cont [12/16] 0.0, 128
        %842 = vxpose.xlu0.b32.cont [13/16] 0.0, 128
        %843 = vxpose.xlu0.b32.cont [14/16] 0.0, 128
        %844 = vxpose.xlu0.b32.cont [15/16] 0.0, 128
        %845 = vxpose.xlu0.b32.end [16/16] 0.0, 128
        %v846 = vpop.trf.xlu0
        %v847 = vpop.trf.xlu0
        %v848 = vpop.trf.xlu0
        %v849 = vpop.trf.xlu0
        %v850 = vpop.trf.xlu0
        %v851 = vpop.trf.xlu0
        %v852 = vpop.trf.xlu0
        %v853 = vpop.trf.xlu0
        %v854 = vpop.trf.xlu0
        %v855 = vpop.trf.xlu0
        %v856 = vpop.trf.xlu0
        %v857 = vpop.trf.xlu0
        %v858 = vpop.trf.xlu0
        %v859 = vpop.trf.xlu0
        %v860 = vpop.trf.xlu0
        %v861 = vpop.trf.xlu0
        %862 = vxpose.xlu0.b32.start [1/16] %v757, 128
        %863 = vxpose.xlu0.b32.cont [2/16] 0.0, 128
        %864 = vxpose.xlu0.b32.cont [3/16] 0.0, 128
        %865 = vxpose.xlu0.b32.cont [4/16] 0.0, 128
        %866 = vxpose.xlu0.b32.cont [5/16] 0.0, 128
        %867 = vxpose.xlu0.b32.cont [6/16] 0.0, 128
        %868 = vxpose.xlu0.b32.cont [7/16] 0.0, 128
        %869 = vxpose.xlu0.b32.cont [8/16] 0.0, 128
        %870 = vxpose.xlu0.b32.cont [9/16] 0.0, 128
        %871 = vxpose.xlu0.b32.cont [10/16] 0.0, 128
        %872 = vxpose.xlu0.b32.cont [11/16] 0.0, 128
        %873 = vxpose.xlu0.b32.cont [12/16] 0.0, 128
        %874 = vxpose.xlu0.b32.cont [13/16] 0.0, 128
        %875 = vxpose.xlu0.b32.cont [14/16] 0.0, 128
        %876 = vxpose.xlu0.b32.cont [15/16] 0.0, 128
        %877 = vxpose.xlu0.b32.end [16/16] 0.0, 128
        %v878 = vpop.trf.xlu0
        %v879 = vpop.trf.xlu0
        %v880 = vpop.trf.xlu0
        %v881 = vpop.trf.xlu0
        %v882 = vpop.trf.xlu0
        %v883 = vpop.trf.xlu0
        %v884 = vpop.trf.xlu0
        %v885 = vpop.trf.xlu0
        %v886 = vpop.trf.xlu0
        %v887 = vpop.trf.xlu0
        %v888 = vpop.trf.xlu0
        %v889 = vpop.trf.xlu0
        %v890 = vpop.trf.xlu0
        %v891 = vpop.trf.xlu0
        %v892 = vpop.trf.xlu0
        %v893 = vpop.trf.xlu0
        %894 = vxpose.xlu0.b32.start [1/16] %v759, 128
        %895 = vxpose.xlu0.b32.cont [2/16] 0.0, 128
        %896 = vxpose.xlu0.b32.cont [3/16] 0.0, 128
        %897 = vxpose.xlu0.b32.cont [4/16] 0.0, 128
        %898 = vxpose.xlu0.b32.cont [5/16] 0.0, 128
        %899 = vxpose.xlu0.b32.cont [6/16] 0.0, 128
        %900 = vxpose.xlu0.b32.cont [7/16] 0.0, 128
        %901 = vxpose.xlu0.b32.cont [8/16] 0.0, 128
        %902 = vxpose.xlu0.b32.cont [9/16] 0.0, 128
        %903 = vxpose.xlu0.b32.cont [10/16] 0.0, 128
        %904 = vxpose.xlu0.b32.cont [11/16] 0.0, 128
        %905 = vxpose.xlu0.b32.cont [12/16] 0.0, 128
        %906 = vxpose.xlu0.b32.cont [13/16] 0.0, 128
        %907 = vxpose.xlu0.b32.cont [14/16] 0.0, 128
        %908 = vxpose.xlu0.b32.cont [15/16] 0.0, 128
        %909 = vxpose.xlu0.b32.end [16/16] 0.0, 128
        %v910 = vpop.trf.xlu0
        %v911 = vpop.trf.xlu0
        %v912 = vpop.trf.xlu0
        %v913 = vpop.trf.xlu0
        %v914 = vpop.trf.xlu0
        %v915 = vpop.trf.xlu0
        %v916 = vpop.trf.xlu0
        %v917 = vpop.trf.xlu0
        %v918 = vpop.trf.xlu0
        %v919 = vpop.trf.xlu0
        %v920 = vpop.trf.xlu0
        %v921 = vpop.trf.xlu0
        %v922 = vpop.trf.xlu0
        %v923 = vpop.trf.xlu0
        %v924 = vpop.trf.xlu0
        %v925 = vpop.trf.xlu0
        %926 = vxpose.xlu0.b32.start [1/16] %v761, 128
        %927 = vxpose.xlu0.b32.cont [2/16] 0.0, 128
        %928 = vxpose.xlu0.b32.cont [3/16] 0.0, 128
        %929 = vxpose.xlu0.b32.cont [4/16] 0.0, 128
        %930 = vxpose.xlu0.b32.cont [5/16] 0.0, 128
        %931 = vxpose.xlu0.b32.cont [6/16] 0.0, 128
        %932 = vxpose.xlu0.b32.cont [7/16] 0.0, 128
        %933 = vxpose.xlu0.b32.cont [8/16] 0.0, 128
        %934 = vxpose.xlu0.b32.cont [9/16] 0.0, 128
        %935 = vxpose.xlu0.b32.cont [10/16] 0.0, 128
        %936 = vxpose.xlu0.b32.cont [11/16] 0.0, 128
        %937 = vxpose.xlu0.b32.cont [12/16] 0.0, 128
        %938 = vxpose.xlu0.b32.cont [13/16] 0.0, 128
        %939 = vxpose.xlu0.b32.cont [14/16] 0.0, 128
        %940 = vxpose.xlu0.b32.cont [15/16] 0.0, 128
        %941 = vxpose.xlu0.b32.end [16/16] 0.0, 128
        %v942 = vpop.trf.xlu0
        %v943 = vpop.trf.xlu0
        %v944 = vpop.trf.xlu0
        %v945 = vpop.trf.xlu0
        %v946 = vpop.trf.xlu0
        %v947 = vpop.trf.xlu0
        %v948 = vpop.trf.xlu0
        %v949 = vpop.trf.xlu0
        %v950 = vpop.trf.xlu0
        %v951 = vpop.trf.xlu0
        %v952 = vpop.trf.xlu0
        %v953 = vpop.trf.xlu0
        %v954 = vpop.trf.xlu0
        %v955 = vpop.trf.xlu0
        %v956 = vpop.trf.xlu0
        %v957 = vpop.trf.xlu0
        %958 = vxpose.xlu0.b32.start [1/16] %v763, 128
        %959 = vxpose.xlu0.b32.cont [2/16] 0.0, 128
        %960 = vxpose.xlu0.b32.cont [3/16] 0.0, 128
        %961 = vxpose.xlu0.b32.cont [4/16] 0.0, 128
        %962 = vxpose.xlu0.b32.cont [5/16] 0.0, 128
        %963 = vxpose.xlu0.b32.cont [6/16] 0.0, 128
        %964 = vxpose.xlu0.b32.cont [7/16] 0.0, 128
        %965 = vxpose.xlu0.b32.cont [8/16] 0.0, 128
        %966 = vxpose.xlu0.b32.cont [9/16] 0.0, 128
        %967 = vxpose.xlu0.b32.cont [10/16] 0.0, 128
        %968 = vxpose.xlu0.b32.cont [11/16] 0.0, 128
        %969 = vxpose.xlu0.b32.cont [12/16] 0.0, 128
        %970 = vxpose.xlu0.b32.cont [13/16] 0.0, 128
        %971 = vxpose.xlu0.b32.cont [14/16] 0.0, 128
        %972 = vxpose.xlu0.b32.cont [15/16] 0.0, 128
        %973 = vxpose.xlu0.b32.end [16/16] 0.0, 128
        %v974 = vpop.trf.xlu0
        %v975 = vpop.trf.xlu0
        %v976 = vpop.trf.xlu0
        %v977 = vpop.trf.xlu0
        %v978 = vpop.trf.xlu0
        %v979 = vpop.trf.xlu0
        %v980 = vpop.trf.xlu0
        %v981 = vpop.trf.xlu0
        %v982 = vpop.trf.xlu0
        %v983 = vpop.trf.xlu0
        %v984 = vpop.trf.xlu0
        %v985 = vpop.trf.xlu0
        %v986 = vpop.trf.xlu0
        %v987 = vpop.trf.xlu0
        %v988 = vpop.trf.xlu0
        %v989 = vpop.trf.xlu0
        %990 = vxpose.xlu0.b32.start [1/16] %v765, 128
        %991 = vxpose.xlu0.b32.cont [2/16] 0.0, 128
        %992 = vxpose.xlu0.b32.cont [3/16] 0.0, 128
        %993 = vxpose.xlu0.b32.cont [4/16] 0.0, 128
        %994 = vxpose.xlu0.b32.cont [5/16] 0.0, 128
        %995 = vxpose.xlu0.b32.cont [6/16] 0.0, 128
        %996 = vxpose.xlu0.b32.cont [7/16] 0.0, 128
        %997 = vxpose.xlu0.b32.cont [8/16] 0.0, 128
        %998 = vxpose.xlu0.b32.cont [9/16] 0.0, 128
        %999 = vxpose.xlu0.b32.cont [10/16] 0.0, 128
        %1000 = vxpose.xlu0.b32.cont [11/16] 0.0, 128
        %1001 = vxpose.xlu0.b32.cont [12/16] 0.0, 128
        %1002 = vxpose.xlu0.b32.cont [13/16] 0.0, 128
        %1003 = vxpose.xlu0.b32.cont [14/16] 0.0, 128
        %1004 = vxpose.xlu0.b32.cont [15/16] 0.0, 128
        %1005 = vxpose.xlu0.b32.end [16/16] 0.0, 128
        %v1006 = vpop.trf.xlu0
        %v1007 = vpop.trf.xlu0
        %v1008 = vpop.trf.xlu0
        %v1009 = vpop.trf.xlu0
        %v1010 = vpop.trf.xlu0
        %v1011 = vpop.trf.xlu0
        %v1012 = vpop.trf.xlu0
        %v1013 = vpop.trf.xlu0
        %v1014 = vpop.trf.xlu0
        %v1015 = vpop.trf.xlu0
        %v1016 = vpop.trf.xlu0
        %v1017 = vpop.trf.xlu0
        %v1018 = vpop.trf.xlu0
        %v1019 = vpop.trf.xlu0
        %v1020 = vpop.trf.xlu0
        %v1021 = vpop.trf.xlu0
        %v1022 = vrot.slane %v846, 4
        %v1023 = vsel %vm342, %v1022, %v782
        %v1025 = vunpack.c.l.s4 1983009808
        %v1026 = vunpack.c.0.s8 %v1025
        %v1027 = vperm.slane %v1023, %v1026
        %v1028 = vrot.slane %v878, 4
        %v1029 = vsel %vm342, %v1028, %v814
        %v1031 = vunpack.c.l.s4 1983009808
        %v1032 = vunpack.c.0.s8 %v1031
        %v1033 = vperm.slane %v1029, %v1032
        %v1034 = vrot.slane %v974, 4
        %v1035 = vsel %vm342, %v1034, %v910
        %v1037 = vunpack.c.l.s4 1983009808
        %v1038 = vunpack.c.0.s8 %v1037
        %v1039 = vperm.slane %v1035, %v1038
        %v1040 = vrot.slane %v1006, 4
        %v1041 = vsel %vm342, %v1040, %v942
        %v1043 = vunpack.c.l.s4 1983009808
        %v1044 = vunpack.c.0.s8 %v1043
        %v1045 = vperm.slane %v1041, %v1044
        %v1046 = vrot.slane %v1033, 4
        %v1047 = vsel %vm342, %v1046, %v1027
        %v1048 = vrot.slane %v1027, 4
        %v1049 = vsel %vm342, %v1033, %v1048
        %v1051 = vunpack.c.l.s4 1934713408
        %v1052 = vunpack.c.0.s8 %v1051
        %v1053 = vperm.slane %v1047, %v1052
        %v1055 = vunpack.c.l.s4 1934713408
        %v1056 = vunpack.c.0.s8 %v1055
        %v1057 = vperm.slane %v1049, %v1056
        %v1058 = vrot.slane %v1045, 4
        %v1059 = vsel %vm342, %v1058, %v1039
        %v1060 = vrot.slane %v1039, 4
        %v1061 = vsel %vm342, %v1045, %v1060
        %v1063 = vunpack.c.l.s4 1934713408
        %v1064 = vunpack.c.0.s8 %v1063
        %v1065 = vperm.slane %v1059, %v1064
        %v1067 = vunpack.c.l.s4 1934713408
        %v1068 = vunpack.c.0.s8 %v1067
        %v1069 = vperm.slane %v1061, %v1068
        %v1070 = vrot.slane %v1065, 4
        %v1071 = vsel %vm342, %v1070, %v1053
        %v1072 = vrot.slane %v1053, 4
        %v1073 = vsel %vm342, %v1065, %v1072
        %v1074 = vrot.slane %v1069, 4
        %v1075 = vsel %vm342, %v1074, %v1057
        %v1076 = vrot.slane %v1057, 4
        %v1077 = vsel %vm342, %v1069, %v1076
        %vm1078 = vcmask 64512
        %v1080 = vsel %vm1078, %v391, 0
        %1082 = vmatpush.msra.mxu0 0.0
        %1083 = vmatpush.msra.mxu0 0.0
        %1084 = vmatpush.msra.mxu0 0.0
        %1085 = vmatpush.msra.mxu0 0.0
        %1086 = vmatpush.msra.mxu0 0.0
        %1087 = vmatpush.msra.mxu0 0.0
        %1088 = vmatpush.msra.mxu0 0.0
        %1089 = vmatpush.msra.mxu0 0.0
        %1090 = vmatpush.msra.mxu0 0.0
        %1091 = vmatpush.msra.mxu0 0.0
        %1092 = vmatpush.msra.mxu0 0.0
        %1093 = vmatpush.msra.mxu0 0.0
        %1094 = vmatpush.msra.mxu0 0.0
        %1095 = vmatpush.msra.mxu0 0.0
        %1096 = vmatpush.msra.mxu0 0.0
        %1097 = vmatpush.msra.mxu0 %v1071
        %1098 = vmatmul.f32.gmra.mxu0 %v1080
        %v1099 = vpop.f32.mrf.mxu0
        %v1100 = vadd.f32 0.0, %v1099
        %1101 = vdwg.mxu0
        %v1103 = vsel %vm1078, %v393, 0
        %1105 = vmatpush.msra.mxu0 0.0
        %1106 = vmatpush.msra.mxu0 0.0
        %1107 = vmatpush.msra.mxu0 0.0
        %1108 = vmatpush.msra.mxu0 0.0
        %1109 = vmatpush.msra.mxu0 0.0
        %1110 = vmatpush.msra.mxu0 0.0
        %1111 = vmatpush.msra.mxu0 0.0
        %1112 = vmatpush.msra.mxu0 0.0
        %1113 = vmatpush.msra.mxu0 0.0
        %1114 = vmatpush.msra.mxu0 0.0
        %1115 = vmatpush.msra.mxu0 0.0
        %1116 = vmatpush.msra.mxu0 0.0
        %1117 = vmatpush.msra.mxu0 0.0
        %1118 = vmatpush.msra.mxu0 0.0
        %1119 = vmatpush.msra.mxu0 0.0
        %1120 = vmatpush.msra.mxu0 %v1073
        %1121 = vmatmul.f32.gmra.mxu0 %v1103
        %v1122 = vpop.f32.mrf.mxu0
        %v1123 = vadd.f32 0.0, %v1122
        %1124 = vdwg.mxu0
        %v1126 = vsel %vm1078, %v395, 0
        %1128 = vmatpush.msra.mxu0 0.0
        %1129 = vmatpush.msra.mxu0 0.0
        %1130 = vmatpush.msra.mxu0 0.0
        %1131 = vmatpush.msra.mxu0 0.0
        %1132 = vmatpush.msra.mxu0 0.0
        %1133 = vmatpush.msra.mxu0 0.0
        %1134 = vmatpush.msra.mxu0 0.0
        %1135 = vmatpush.msra.mxu0 0.0
        %1136 = vmatpush.msra.mxu0 0.0
        %1137 = vmatpush.msra.mxu0 0.0
        %1138 = vmatpush.msra.mxu0 0.0
        %1139 = vmatpush.msra.mxu0 0.0
        %1140 = vmatpush.msra.mxu0 0.0
        %1141 = vmatpush.msra.mxu0 0.0
        %1142 = vmatpush.msra.mxu0 0.0
        %1143 = vmatpush.msra.mxu0 %v1075
        %1144 = vmatmul.f32.gmra.mxu0 %v1126
        %v1145 = vpop.f32.mrf.mxu0
        %v1146 = vadd.f32 0.0, %v1145
        %1147 = vdwg.mxu0
        %v1149 = vsel %vm1078, %v397, 0
        %1151 = vmatpush.msra.mxu0 0.0
        %1152 = vmatpush.msra.mxu0 0.0
        %1153 = vmatpush.msra.mxu0 0.0
        %1154 = vmatpush.msra.mxu0 0.0
        %1155 = vmatpush.msra.mxu0 0.0
        %1156 = vmatpush.msra.mxu0 0.0
        %1157 = vmatpush.msra.mxu0 0.0
        %1158 = vmatpush.msra.mxu0 0.0
        %1159 = vmatpush.msra.mxu0 0.0
        %1160 = vmatpush.msra.mxu0 0.0
        %1161 = vmatpush.msra.mxu0 0.0
        %1162 = vmatpush.msra.mxu0 0.0
        %1163 = vmatpush.msra.mxu0 0.0
        %1164 = vmatpush.msra.mxu0 0.0
        %1165 = vmatpush.msra.mxu0 0.0
        %1166 = vmatpush.msra.mxu0 %v1077
        %1167 = vmatmul.f32.gmra.mxu0 %v1149
        %v1168 = vpop.f32.mrf.mxu0
        %v1169 = vadd.f32 0.0, %v1168
        %1170 = vdwg.mxu0
        %v1171 = vsel %vm1078, %v1100, -inf
        %1172 = vmax.xlane.f32.xlu0 %v1171
        %v1173 = vpop.xlane.xlu0 %1172
        %v1174 = vsel %vm1078, %v1123, -inf
        %1175 = vmax.xlane.f32.xlu0 %v1174
        %v1176 = vpop.xlane.xlu0 %1175
        %v1177 = vsel %vm1078, %v1146, -inf
        %1178 = vmax.xlane.f32.xlu0 %v1177
        %v1179 = vpop.xlane.xlu0 %1178
        %v1180 = vsel %vm1078, %v1169, -inf
        %1181 = vmax.xlane.f32.xlu0 %v1180
        %v1182 = vpop.xlane.xlu0 %1181
        %v1183 = vsub.f32 %v1100, %v1173
        %v1184 = vsub.f32 %v1123, %v1176
        %v1185 = vsub.f32 %v1146, %v1179
        %v1186 = vsub.f32 %v1169, %v1182
        %v1187 = vmul.f32 %v1183, 1.442695
        %v1188 = vpow.pop %v1187
        %v1189 = vmul.f32 %v1184, 1.442695
        %v1190 = vpow.pop %v1189
        %v1191 = vmul.f32 %v1185, 1.442695
        %v1192 = vpow.pop %v1191
        %v1193 = vmul.f32 %v1186, 1.442695
        %v1194 = vpow.pop %v1193
        %v1195 = vsel %vm1078, %v1188, 0.0
        %1196 = vadd.xlane.f32.xlu0 %v1195
        %v1197 = vpop.xlane.xlu0 %1196
        %v1198 = vsel %vm1078, %v1190, 0.0
        %1199 = vadd.xlane.f32.xlu0 %v1198
        %v1200 = vpop.xlane.xlu0 %1199
        %v1201 = vsel %vm1078, %v1192, 0.0
        %1202 = vadd.xlane.f32.xlu0 %v1201
        %v1203 = vpop.xlane.xlu0 %1202
        %v1204 = vsel %vm1078, %v1194, 0.0
        %1205 = vadd.xlane.f32.xlu0 %v1204
        %v1206 = vpop.xlane.xlu0 %1205
        %v1207 = vrcp.pop %v1197
        %v1208 = vmul.f32 %v1197, %v1207
        %v1209 = vsub.f32 1.0, %v1208
        %v1210 = vmul.f32 %v1207, %v1209
        %v1211 = vadd.f32 %v1207, %v1210
        %vm1212 = vweird.f32 %v1197
        %vm1213 = vweird.f32 %v1207
        %vm1214 = vmor %vm1212, %vm1213
        %v1215 = vsel %vm1214, %v1207, %v1211
        %v1216 = vand.u32 2147483647, %v1197
        %vm1217 = vcmp.eq.f32.partialorder %v1216, 8.507059e+37
        %v1218 = vand.u32 %v1197, 2147483648
        %v1219 = vor.u32 1.1754944e-38, %v1218
        %v1220 = vsel %vm1217, %v1219, %v1215
        %v1221 = vmul.f32 1.0, %v1220
        %v1222 = vrcp.pop %v1200
        %v1223 = vmul.f32 %v1200, %v1222
        %v1224 = vsub.f32 1.0, %v1223
        %v1225 = vmul.f32 %v1222, %v1224
        %v1226 = vadd.f32 %v1222, %v1225
        %vm1227 = vweird.f32 %v1200
        %vm1228 = vweird.f32 %v1222
        %vm1229 = vmor %vm1227, %vm1228
        %v1230 = vsel %vm1229, %v1222, %v1226
        %v1231 = vand.u32 2147483647, %v1200
        %vm1232 = vcmp.eq.f32.partialorder %v1231, 8.507059e+37
        %v1233 = vand.u32 %v1200, 2147483648
        %v1234 = vor.u32 1.1754944e-38, %v1233
        %v1235 = vsel %vm1232, %v1234, %v1230
        %v1236 = vmul.f32 1.0, %v1235
        %v1237 = vrcp.pop %v1203
        %v1238 = vmul.f32 %v1203, %v1237
        %v1239 = vsub.f32 1.0, %v1238
        %v1240 = vmul.f32 %v1237, %v1239
        %v1241 = vadd.f32 %v1237, %v1240
        %vm1242 = vweird.f32 %v1203
        %vm1243 = vweird.f32 %v1237
        %vm1244 = vmor %vm1242, %vm1243
        %v1245 = vsel %vm1244, %v1237, %v1241
        %v1246 = vand.u32 2147483647, %v1203
        %vm1247 = vcmp.eq.f32.partialorder %v1246, 8.507059e+37
        %v1248 = vand.u32 %v1203, 2147483648
        %v1249 = vor.u32 1.1754944e-38, %v1248
        %v1250 = vsel %vm1247, %v1249, %v1245
        %v1251 = vmul.f32 1.0, %v1250
        %v1252 = vrcp.pop %v1206
        %v1253 = vmul.f32 %v1206, %v1252
        %v1254 = vsub.f32 1.0, %v1253
        %v1255 = vmul.f32 %v1252, %v1254
        %v1256 = vadd.f32 %v1252, %v1255
        %vm1257 = vweird.f32 %v1206
        %vm1258 = vweird.f32 %v1252
        %vm1259 = vmor %vm1257, %vm1258
        %v1260 = vsel %vm1259, %v1252, %v1256
        %v1261 = vand.u32 2147483647, %v1206
        %vm1262 = vcmp.eq.f32.partialorder %v1261, 8.507059e+37
        %v1263 = vand.u32 %v1206, 2147483648
        %v1264 = vor.u32 1.1754944e-38, %v1263
        %v1265 = vsel %vm1262, %v1264, %v1260
        %v1266 = vmul.f32 1.0, %v1265
        %v1267 = vrot.slane %v335, 4
        %v1268 = vsel %vm342, %v1267, %v333
        %v1270 = vunpack.c.l.s4 1983009808
        %v1271 = vunpack.c.0.s8 %v1270
        %v1272 = vperm.slane %v1268, %v1271
        %v1273 = vrot.slane %v336, 4
        %v1274 = vsel %vm342, %v1273, %v334
        %v1276 = vunpack.c.l.s4 1983009808
        %v1277 = vunpack.c.0.s8 %v1276
        %v1278 = vperm.slane %v1274, %v1277
        %v1279 = vrot.slane %v339, 4
        %v1280 = vsel %vm342, %v1279, %v337
        %v1282 = vunpack.c.l.s4 1983009808
        %v1283 = vunpack.c.0.s8 %v1282
        %v1284 = vperm.slane %v1280, %v1283
        %v1285 = vrot.slane %v340, 4
        %v1286 = vsel %vm342, %v1285, %v338
        %v1288 = vunpack.c.l.s4 1983009808
        %v1289 = vunpack.c.0.s8 %v1288
        %v1290 = vperm.slane %v1286, %v1289
        %v1291 = vrot.slane %v1278, 4
        %v1292 = vsel %vm342, %v1291, %v1272
        %v1293 = vrot.slane %v1272, 4
        %v1294 = vsel %vm342, %v1278, %v1293
        %v1296 = vunpack.c.l.s4 1934713408
        %v1297 = vunpack.c.0.s8 %v1296
        %v1298 = vperm.slane %v1292, %v1297
        %v1300 = vunpack.c.l.s4 1934713408
        %v1301 = vunpack.c.0.s8 %v1300
        %v1302 = vperm.slane %v1294, %v1301
        %v1303 = vrot.slane %v1290, 4
        %v1304 = vsel %vm342, %v1303, %v1284
        %v1305 = vrot.slane %v1284, 4
        %v1306 = vsel %vm342, %v1290, %v1305
        %v1308 = vunpack.c.l.s4 1934713408
        %v1309 = vunpack.c.0.s8 %v1308
        %v1310 = vperm.slane %v1304, %v1309
        %v1312 = vunpack.c.l.s4 1934713408
        %v1313 = vunpack.c.0.s8 %v1312
        %v1314 = vperm.slane %v1306, %v1313
        %v1315 = vrot.slane %v1310, 4
        %v1316 = vsel %vm342, %v1315, %v1298
        %v1317 = vrot.slane %v1298, 4
        %v1318 = vsel %vm342, %v1310, %v1317
        %v1319 = vrot.slane %v1314, 4
        %v1320 = vsel %vm342, %v1319, %v1302
        %v1321 = vrot.slane %v1302, 4
        %v1322 = vsel %vm342, %v1314, %v1321
        %v1324 = vsel %vm1078, %v1188, 0
        %1326 = vmatpush.msra.mxu0 0.0
        %1327 = vmatpush.msra.mxu0 0.0
        %1328 = vmatpush.msra.mxu0 0.0
        %1329 = vmatpush.msra.mxu0 0.0
        %1330 = vmatpush.msra.mxu0 0.0
        %1331 = vmatpush.msra.mxu0 0.0
        %1332 = vmatpush.msra.mxu0 0.0
        %1333 = vmatpush.msra.mxu0 0.0
        %1334 = vmatpush.msra.mxu0 0.0
        %1335 = vmatpush.msra.mxu0 0.0
        %1336 = vmatpush.msra.mxu0 0.0
        %1337 = vmatpush.msra.mxu0 0.0
        %1338 = vmatpush.msra.mxu0 0.0
        %1339 = vmatpush.msra.mxu0 0.0
        %1340 = vmatpush.msra.mxu0 0.0
        %1341 = vmatpush.msra.mxu0 %v1316
        %1342 = vmatmul.f32.gmra.mxu0 %v1324
        %v1343 = vpop.f32.mrf.mxu0
        %v1344 = vadd.f32 0.0, %v1343
        %1345 = vdwg.mxu0
        %v1347 = vsel %vm1078, %v1190, 0
        %1349 = vmatpush.msra.mxu0 0.0
        %1350 = vmatpush.msra.mxu0 0.0
        %1351 = vmatpush.msra.mxu0 0.0
        %1352 = vmatpush.msra.mxu0 0.0
        %1353 = vmatpush.msra.mxu0 0.0
        %1354 = vmatpush.msra.mxu0 0.0
        %1355 = vmatpush.msra.mxu0 0.0
        %1356 = vmatpush.msra.mxu0 0.0
        %1357 = vmatpush.msra.mxu0 0.0
        %1358 = vmatpush.msra.mxu0 0.0
        %1359 = vmatpush.msra.mxu0 0.0
        %1360 = vmatpush.msra.mxu0 0.0
        %1361 = vmatpush.msra.mxu0 0.0
        %1362 = vmatpush.msra.mxu0 0.0
        %1363 = vmatpush.msra.mxu0 0.0
        %1364 = vmatpush.msra.mxu0 %v1318
        %1365 = vmatmul.f32.gmra.mxu0 %v1347
        %v1366 = vpop.f32.mrf.mxu0
        %v1367 = vadd.f32 0.0, %v1366
        %1368 = vdwg.mxu0
        %v1370 = vsel %vm1078, %v1192, 0
        %1372 = vmatpush.msra.mxu0 0.0
        %1373 = vmatpush.msra.mxu0 0.0
        %1374 = vmatpush.msra.mxu0 0.0
        %1375 = vmatpush.msra.mxu0 0.0
        %1376 = vmatpush.msra.mxu0 0.0
        %1377 = vmatpush.msra.mxu0 0.0
        %1378 = vmatpush.msra.mxu0 0.0
        %1379 = vmatpush.msra.mxu0 0.0
        %1380 = vmatpush.msra.mxu0 0.0
        %1381 = vmatpush.msra.mxu0 0.0
        %1382 = vmatpush.msra.mxu0 0.0
        %1383 = vmatpush.msra.mxu0 0.0
        %1384 = vmatpush.msra.mxu0 0.0
        %1385 = vmatpush.msra.mxu0 0.0
        %1386 = vmatpush.msra.mxu0 0.0
        %1387 = vmatpush.msra.mxu0 %v1320
        %1388 = vmatmul.f32.gmra.mxu0 %v1370
        %v1389 = vpop.f32.mrf.mxu0
        %v1390 = vadd.f32 0.0, %v1389
        %1391 = vdwg.mxu0
        %v1393 = vsel %vm1078, %v1194, 0
        %1395 = vmatpush.msra.mxu0 0.0
        %1396 = vmatpush.msra.mxu0 0.0
        %1397 = vmatpush.msra.mxu0 0.0
        %1398 = vmatpush.msra.mxu0 0.0
        %1399 = vmatpush.msra.mxu0 0.0
        %1400 = vmatpush.msra.mxu0 0.0
        %1401 = vmatpush.msra.mxu0 0.0
        %1402 = vmatpush.msra.mxu0 0.0
        %1403 = vmatpush.msra.mxu0 0.0
        %1404 = vmatpush.msra.mxu0 0.0
        %1405 = vmatpush.msra.mxu0 0.0
        %1406 = vmatpush.msra.mxu0 0.0
        %1407 = vmatpush.msra.mxu0 0.0
        %1408 = vmatpush.msra.mxu0 0.0
        %1409 = vmatpush.msra.mxu0 0.0
        %1410 = vmatpush.msra.mxu0 %v1322
        %1411 = vmatmul.f32.gmra.mxu0 %v1393
        %v1412 = vpop.f32.mrf.mxu0
        %v1413 = vadd.f32 0.0, %v1412
        %1414 = vdwg.mxu0
        %v1415 = vmul.f32 %v1344, %v1221
        %v1416 = vmul.f32 %v1367, %v1236
        %v1417 = vmul.f32 %v1390, %v1251
        %v1418 = vmul.f32 %v1413, %v1266
        %v1419 = vrot.slane %v1417, 4
        %v1420 = vsel %vm342, %v1419, %v1415
        %v1421 = vrot.slane %v1415, 4
        %v1422 = vsel %vm342, %v1417, %v1421
        %v1424 = vunpack.c.l.s4 1983009808
        %v1425 = vunpack.c.0.s8 %v1424
        %v1426 = vperm.slane %v1420, %v1425
        %v1428 = vunpack.c.l.s4 1983009808
        %v1429 = vunpack.c.0.s8 %v1428
        %v1430 = vperm.slane %v1422, %v1429
        %v1431 = vrot.slane %v1418, 4
        %v1432 = vsel %vm342, %v1431, %v1416
        %v1433 = vrot.slane %v1416, 4
        %v1434 = vsel %vm342, %v1418, %v1433
        %v1436 = vunpack.c.l.s4 1983009808
        %v1437 = vunpack.c.0.s8 %v1436
        %v1438 = vperm.slane %v1432, %v1437
        %v1440 = vunpack.c.l.s4 1983009808
        %v1441 = vunpack.c.0.s8 %v1440
        %v1442 = vperm.slane %v1434, %v1441
        %v1443 = vrot.slane %v1438, 4
        %v1444 = vsel %vm342, %v1443, %v1426
        %v1445 = vrot.slane %v1426, 4
        %v1446 = vsel %vm342, %v1438, %v1445
        %v1448 = vunpack.c.l.s4 1934713408
        %v1449 = vunpack.c.0.s8 %v1448
        %v1450 = vperm.slane %v1444, %v1449
        %v1452 = vunpack.c.l.s4 1934713408
        %v1453 = vunpack.c.0.s8 %v1452
        %v1454 = vperm.slane %v1446, %v1453
        %v1455 = vrot.slane %v1442, 4
        %v1456 = vsel %vm342, %v1455, %v1430
        %v1457 = vrot.slane %v1430, 4
        %v1458 = vsel %vm342, %v1442, %v1457
        %v1460 = vunpack.c.l.s4 1934713408
        %v1461 = vunpack.c.0.s8 %v1460
        %v1462 = vperm.slane %v1456, %v1461
        %v1464 = vunpack.c.l.s4 1934713408
        %v1465 = vunpack.c.0.s8 %v1464
        %v1466 = vperm.slane %v1458, %v1465
        %v1467 = vrot.slane %v1450, 4
        %v1468 = vsel %vm342, 0.0, %v1467
        %v1469 = vrot.slane %v1454, 4
        %v1470 = vsel %vm342, 0.0, %v1469
        %v1471 = vrot.slane %v1462, 4
        %v1472 = vsel %vm342, 0.0, %v1471
        %v1473 = vrot.slane %v1466, 4
        %v1474 = vsel %vm342, 0.0, %v1473
        %v1475 = vsel %vm342, %v1469, %v1450
        %v1477 = vunpack.c.l.s4 1983009808
        %v1478 = vunpack.c.0.s8 %v1477
        %v1479 = vperm.slane %v1475, %v1478
        %v1480 = vrot.slane %v1470, 4
        %v1481 = vsel %vm342, %v1480, %v1468
        %v1483 = vunpack.c.l.s4 1983009808
        %v1484 = vunpack.c.0.s8 %v1483
        %v1485 = vperm.slane %v1481, %v1484
        %v1486 = vsel %vm342, %v1473, %v1462
        %v1488 = vunpack.c.l.s4 1983009808
        %v1489 = vunpack.c.0.s8 %v1488
        %v1490 = vperm.slane %v1486, %v1489
        %v1491 = vrot.slane %v1474, 4
        %v1492 = vsel %vm342, %v1491, %v1472
        %v1494 = vunpack.c.l.s4 1983009808
        %v1495 = vunpack.c.0.s8 %v1494
        %v1496 = vperm.slane %v1492, %v1495
        %v1497 = vrot.slane %v1485, 4
        %v1498 = vsel %vm342, %v1497, %v1479
        %v1499 = vrot.slane %v1479, 4
        %v1500 = vsel %vm342, %v1485, %v1499
        %v1502 = vunpack.c.l.s4 1934713408
        %v1503 = vunpack.c.0.s8 %v1502
        %v1504 = vperm.slane %v1498, %v1503
        %v1506 = vunpack.c.l.s4 1934713408
        %v1507 = vunpack.c.0.s8 %v1506
        %v1508 = vperm.slane %v1500, %v1507
        %v1509 = vrot.slane %v1496, 4
        %v1510 = vsel %vm342, %v1509, %v1490
        %v1511 = vrot.slane %v1490, 4
        %v1512 = vsel %vm342, %v1496, %v1511
        %v1514 = vunpack.c.l.s4 1934713408
        %v1515 = vunpack.c.0.s8 %v1514
        %v1516 = vperm.slane %v1510, %v1515
        %v1518 = vunpack.c.l.s4 1934713408
        %v1519 = vunpack.c.0.s8 %v1518
        %v1520 = vperm.slane %v1512, %v1519
        %v1521 = vrot.slane %v1516, 4
        %v1522 = vsel %vm342, %v1521, %v1504
        %v1523 = vrot.slane %v1504, 4
        %v1524 = vsel %vm342, %v1516, %v1523
        %v1525 = vrot.slane %v1520, 4
        %v1526 = vsel %vm342, %v1525, %v1508
        %v1527 = vrot.slane %v1508, 4
        %v1528 = vsel %vm342, %v1520, %v1527
        %1530 = vrot.lane.b32.xlu0 %v1524, 8
        %v1531 = vpop.permute.xlu0 %1530
        %1534 = vrot.lane.b32.xlu0 %v1526, 16
        %v1535 = vpop.permute.xlu0 %1534
        %1538 = vrot.lane.b32.xlu0 %v1528, 24
        %v1539 = vpop.permute.xlu0 %1538
        %v1541 = vsel %vm1078, %v1522, %v1531
        %vm1542 = vcmask 130048
        %v1543 = vsel %vm1542, %v1541, %v1535
        %vm1544 = vcmask 195584
        %v1545 = vsel %vm1544, %v1543, %v1539
        %vm1546 = vcmask 261120
        %1547 = vst.msk [vmem:[%s307] sm:$0xff] %vm1546, %v1545
        %s1548 = sand.u32 %s140, 1
        %s1549 = scalar_lea.sflag [#allocation4], %s1548
        %s1550 = sand.u32 %s140, 1
        %s1551 = smul.addr %s1550, 8
        %s1552 = scalar_lea.vmem [#allocation8], %s1551
        // Predicated region
        $region45: #{tpu_custom_call.1} parent=31 // pred_check
          %p1553 = pneg %p150
        $region46: #{tpu_custom_call.1} parent=31 // pred_check_branch
          %1555 = sbr.rel (%p1553) target = $region48
        $region47: #{tpu_custom_call.1} parent=31 // pred_region
          %1557 = vsyncadd %s1549, 0
          %s1558 = sadd.s32 %s29, %s30
          %s1559 = sadd.s32 %s1558, %s28
          %s1560 = smul.addr %s1559, 8
          %s1561 = scalar_lea.hbm %s3, %s1560
          %s1563 = sshll.u32 %s1552, 4
          %s1564 = int_to_ptr.vmem [resolvable:$true] %s1563
          %s1565 = sshll.u32 %s1561, 4
          %s1566 = int_to_ptr.hbm [resolvable:$true] %s1565
          %1568 = dma.vmem_to_hbm [thread:$0]  %s1564, 128, %s1566, %s1549
        $region48: #{tpu_custom_call.1} parent=31 // pred_fallthru
          _
      $region32: #{tpu_custom_call.1} parent=5 // pred_fallthru
        _
      %p1569 = scmp.le.s32.totalorder 2, %s18
      // Predicated region
      $region49: #{tpu_custom_call.1} parent=5 // pred_check
        %p1570 = pneg %p1569
      $region50: #{tpu_custom_call.1} parent=5 // pred_check_branch
        %1572 = sbr.rel (%p1570) target = $region52
      $region51: #{tpu_custom_call.1} parent=5 // pred_region
        %s1573 = ssub.s32 %s18, 2
        // Predicated region
        $region53: #{tpu_custom_call.1} parent=51 // pred_check
          %p1574 = pneg %p156
        $region54: #{tpu_custom_call.1} parent=51 // pred_check_branch
          %1576 = sbr.rel (%p1574) target = $region56
        $region55: #{tpu_custom_call.1} parent=51 // pred_region
          %s1577 = sand.u32 %s141, 1
          %s1578 = scalar_lea.sflag [#allocation4], %s1577
          %s1579 = sand.u32 %s141, 1
          %s1580 = smul.addr %s1579, 8
          %s1581 = scalar_lea.vmem [#allocation8], %s1580
          %1583 = dma.done %s1578, 128
        $region56: #{tpu_custom_call.1} parent=51 // pred_fallthru
          _
      $region52: #{tpu_custom_call.1} parent=5 // pred_fallthru
        _
    $region6: #{tpu_custom_call.1} parent=1 // loop_footer
      %s22 = sadd.s32 1, %s18
    $region7: #{tpu_custom_call.1} parent=1 // loop_footer_branch
      %17 = sbr.rel target = $region3
    $region8: #{tpu_custom_call.1} parent=1 // loop_exit
      _
    %1584 = vsyncpa [#allocation3], 1
    %s1585 = scalar_lea.sflag [#allocation3], 1
    %1586 = vsyncpa %s1585, 1
    %1587 = vsyncpa [#allocation6], 1
    %s1588 = scalar_lea.sflag [#allocation6], 1
    %1589 = vsyncpa %s1588, 1
    %1590 = vsyncpa [#allocation4], 1
    %s1591 = scalar_lea.sflag [#allocation4], 1
    %1592 = vsyncpa %s1591, 1

</llo_original>
